<compile_context>
chip_gen: v7x
topology: tpu7x:2x2x1
jax: 0.10.0
libtpu: 0.0.40
codegen_flags: <defaults>
</compile_context>

<pallas_src>
import jax
import jax.numpy as jnp
import numpy as np
from jax.experimental import pallas as pl
from jax.experimental.pallas import tpu as pltpu

# ------------------------- model hyper-parameters -------------------------
B = 256                     # batch (many stacked environments; per review)
TB = 128                    # batch tile per grid step
NUM_OBS = 32                # actor observations
NUM_CRITIC_OBS = 32         # critic observations
PRIV_DIM = 16               # env_factor_encoder_branch_input_dims = [16]
ENC_HIDDEN = (32, 32)       # env_factor_encoder_branch_hidden_dims = [[32, 32]]
LATENT = 8                  # env_factor_encoder_branch_latent_dims = [8]
ACTOR_HIDDEN = (64, 64)
CRITIC_HIDDEN = (64, 64)
NUM_ACTIONS = 8
INIT_NOISE_STD = 1.0        # only used for the (host-side) distribution std

H = ACTOR_HIDDEN[0]                           # 64 (== CRITIC_HIDDEN[0/1])
SLAB = ACTOR_HIDDEN[0] + CRITIC_HIDDEN[0]     # 128: fused actor|critic lane width
LAT_OFF = 16                                  # latent lives in lanes [16, 24) of the slab
assert NUM_ACTIONS + 1 <= LAT_OFF and LAT_OFF + LATENT <= SLAB and SLAB == 128


# ------------------------------ kernel -------------------------------------
def _elu(x):
    # ELU(alpha=1). No clamp: exp(x) of the discarded branch may be inf, but the
    # where() drops it (never a NaN), saving one VPU op per element.
    return jnp.where(x > 0, x, jnp.exp(x) - 1.0)


def _dot(x, w_ref):
    return jnp.dot(x, w_ref[...], preferred_element_type=jnp.float32)


def actor_critic_kernel(
    oc_ref, priv_ref,                          # [TB, 64] obs|critic_obs, [TB, 16] privileged
    ew0, eb0, ew1, eb1, ew2p, eb2p,            # env_factor_encoder (last layer padded to 128 lanes)
    w0_oc, w0_lat, b0,                         # fused actor|critic layer 0 (obs part + latent part)
    w1, b1,                                    # fused actor|critic hidden layer (block diagonal)
    w2, b2,                                    # fused head: actions -> lanes 0:8, value -> lane 8
    out_ref,                                   # [TB, 128] lane-dense output slab
):
    # --- env factor encoder: Lin-ELU, Lin-ELU, Lin (last layer lands latent in lanes 16:24) ---
    e = _elu(_dot(priv_ref[...], ew0) + eb0[...])
    e = _elu(_dot(e, ew1) + eb1[...])
    latent_slab = _dot(e, ew2p) + eb2p[...]          # (TB,128), nonzero only in lanes 16:24

    # --- fused actor|critic layer 0: concat realised via pre-packed weights ---
    h = _elu(_dot(oc_ref[...], w0_oc) + _dot(latent_slab, w0_lat) + b0[...])
    # --- fused hidden layer (block-diagonal 128x128) ---
    h = _elu(_dot(h, w1) + b1[...])
    # --- fused head: one 128-wide matmul fills actions (lanes 0:8) and value (lane 8) ---
    head = _dot(h, w2) + b2[...]                     # nonzero only in lanes 0:9

    # torch.nan_to_num(mean, nan=0, posinf=0, neginf=0) -- applied to action lanes only.
    col = jax.lax.broadcasted_iota(jnp.int32, head.shape, 1)
    head = jnp.where((col < NUM_ACTIONS) & ~jnp.isfinite(head), 0.0, head)

    # Single unmasked lane-dense store (actions | value | latent packed in one slab).
    out_ref[...] = head + latent_slab


# --------------------- weight packing (wrapper-side, one-off) ----------------
def pack_params(params):
    (ew0, eb0), (ew1, eb1), (ew2, eb2), \
        (aw0, ab0), (aw1, ab1), (aw2, ab2), \
        (cw0, cb0), (cw1, cb1), (cw2, cb2) = params
    f32 = jnp.float32

    # Encoder final layer padded to the 128-lane slab (latent at LAT_OFF).
    ew2p = jnp.zeros((ENC_HIDDEN[1], SLAB), f32).at[:, LAT_OFF:LAT_OFF + LATENT].set(ew2)
    eb2p = jnp.zeros((1, SLAB), f32).at[:, LAT_OFF:LAT_OFF + LATENT].set(eb2)

    # Fused actor|critic layer 0: obs part (block diagonal over obs|critic_obs)
    # and latent part (rows = latent lanes of the slab).
    w0_oc = jnp.zeros((NUM_OBS + NUM_CRITIC_OBS, SLAB), f32)
    w0_oc = w0_oc.at[:NUM_OBS, :H].set(aw0[:NUM_OBS])
    w0_oc = w0_oc.at[NUM_OBS:, H:].set(cw0[:NUM_CRITIC_OBS])
    w0_lat = jnp.zeros((SLAB, SLAB), f32)
    w0_lat = w0_lat.at[LAT_OFF:LAT_OFF + LATENT, :H].set(aw0[NUM_OBS:])
    w0_lat = w0_lat.at[LAT_OFF:LAT_OFF + LATENT, H:].set(cw0[NUM_CRITIC_OBS:])
    b0 = jnp.concatenate([ab0, cb0], axis=1)

    # Fused hidden layer: block-diagonal 128x128.
    w1 = jnp.zeros((SLAB, SLAB), f32).at[:H, :H].set(aw1).at[H:, H:].set(cw1)
    b1 = jnp.concatenate([ab1, cb1], axis=1)

    # Fused head: actions -> lanes 0:8 (from actor half), value -> lane 8 (from critic half).
    w2 = jnp.zeros((SLAB, SLAB), f32)
    w2 = w2.at[:H, :NUM_ACTIONS].set(aw2)
    w2 = w2.at[H:, NUM_ACTIONS:NUM_ACTIONS + 1].set(cw2)
    b2 = jnp.zeros((1, SLAB), f32)
    b2 = b2.at[:, :NUM_ACTIONS].set(ab2)
    b2 = b2.at[:, NUM_ACTIONS:NUM_ACTIONS + 1].set(cb2)

    return [ew0, eb0, ew1, eb1, ew2p, eb2p, w0_oc, w0_lat, b0, w1, b1, w2, b2]


# ------------------------------ wrapper -------------------------------------
def actor_critic_forward(obs, critic_obs, priv_obs, packed, *, tile_b=TB):
    n = obs.shape[0]
    pad = (-n) % tile_b
    if pad:
        obs = jnp.pad(obs, ((0, pad), (0, 0)))
        critic_obs = jnp.pad(critic_obs, ((0, pad), (0, 0)))
        priv_obs = jnp.pad(priv_obs, ((0, pad), (0, 0)))
    bn = obs.shape[0]
    oc = jnp.concatenate([obs, critic_obs], axis=-1)      # (bn, 64): obs | critic_obs

    def batch_spec(feat):
        return pl.BlockSpec((tile_b, feat), lambda i: (i, 0))

    def weight_spec(p):
        # Constant index_map: block never changes across grid steps -> stays VMEM-resident.
        return pl.BlockSpec(p.shape, lambda i: (0, 0))

    in_specs = [batch_spec(NUM_OBS + NUM_CRITIC_OBS), batch_spec(PRIV_DIM)]
    in_specs += [weight_spec(p) for p in packed]

    slab = pl.pallas_call(
        actor_critic_kernel,
        out_shape=jax.ShapeDtypeStruct((bn, SLAB), jnp.float32),
        grid=(bn // tile_b,),
        in_specs=in_specs,
        out_specs=pl.BlockSpec((tile_b, SLAB), lambda i: (i, 0)),
        compiler_params=pltpu.CompilerParams(
            dimension_semantics=("parallel",),      # megacore sharding on v7x; harmless elsewhere
        ),
    )(oc, priv_obs, *packed)

    slab = slab[:n]
    actions_mean = slab[:, :NUM_ACTIONS]
    value = slab[:, NUM_ACTIONS:NUM_ACTIONS + 1]
    latent = slab[:, LAT_OFF:LAT_OFF + LATENT]
    return actions_mean, value, latent


# ------------------------ deterministic parameter init ----------------------
def init_linear(key, in_dim, out_dim, scale=0.1):
    kw, kb = jax.random.split(key)
    w = scale * jax.random.normal(kw, (in_dim, out_dim), jnp.float32)
    b = scale * jax.random.normal(kb, (1, out_dim), jnp.float32)
    return w, b


def init_params(key):
    dims = [
        # env_factor_encoder: 16 -> 32 -> 32 -> 8
        (PRIV_DIM, ENC_HIDDEN[0]), (ENC_HIDDEN[0], ENC_HIDDEN[1]), (ENC_HIDDEN[1], LATENT),
        # actor: (32 + 8) -> 64 -> 64 -> 8
        (NUM_OBS + LATENT, ACTOR_HIDDEN[0]), (ACTOR_HIDDEN[0], ACTOR_HIDDEN[1]),
        (ACTOR_HIDDEN[1], NUM_ACTIONS),
        # critic: (32 + 8) -> 64 -> 64 -> 1
        (NUM_CRITIC_OBS + LATENT, CRITIC_HIDDEN[0]), (CRITIC_HIDDEN[0], CRITIC_HIDDEN[1]),
        (CRITIC_HIDDEN[1], 1),
    ]
    keys = jax.random.split(key, len(dims))
    return [init_linear(k, i, o) for k, (i, o) in zip(keys, dims)]


# ---------------------------- plain-JAX reference ---------------------------
def reference_forward(obs, critic_obs, priv_obs, params):
    def elu(x):
        return jnp.where(x > 0, x, jnp.expm1(x))

    def mlp(x, layers):
        for i, (w, b) in enumerate(layers):
            x = jnp.dot(x, w, precision=jax.lax.Precision.HIGHEST) + b
            if i < len(layers) - 1:
                x = elu(x)
        return x

    enc, act, crit = params[:3], params[3:6], params[6:9]
    latent = mlp(priv_obs, enc)
    mean = mlp(jnp.concatenate([obs, latent], axis=-1), act)
    mean = jnp.where(jnp.isfinite(mean), mean, 0.0)
    value = mlp(jnp.concatenate([critic_obs, latent], axis=-1), crit)
    return mean, value, latent


# --------------------------------- main --------------------------------------
if __name__ == "__main__":
    key = jax.random.PRNGKey(0)
    k_obs, k_cobs, k_priv, k_params = jax.random.split(key, 4)

    obs = jax.random.normal(k_obs, (B, NUM_OBS), jnp.float32)
    critic_obs = jax.random.normal(k_cobs, (B, NUM_CRITIC_OBS), jnp.float32)
    priv_obs = jax.random.normal(k_priv, (B, PRIV_DIM), jnp.float32)

    params = init_params(k_params)
    packed = pack_params(params)

    # nn.Parameter self.std (host-side; used only for the Normal distribution).
    std = INIT_NOISE_STD * jnp.ones((NUM_ACTIONS,), jnp.float32)
    std = jnp.where(jnp.isfinite(std), std, 0.001)   # torch.nan_to_num(self.std, ...)

    actions_mean, value, latent = jax.block_until_ready(
        actor_critic_forward(obs, critic_obs, priv_obs, packed)
    )

    ref_mean, ref_value, ref_latent = reference_forward(obs, critic_obs, priv_obs, params)
    np.testing.assert_allclose(np.asarray(actions_mean), np.asarray(ref_mean),
                               rtol=1e-4, atol=1e-5)
    np.testing.assert_allclose(np.asarray(value), np.asarray(ref_value),
                               rtol=1e-4, atol=1e-5)
    np.testing.assert_allclose(np.asarray(latent), np.asarray(ref_latent),
                               rtol=1e-4, atol=1e-5)

    print("KERNEL_OK")
</pallas_src>

<mosaic_0001>
module attributes {stable_mosaic.version = 11 : i64} {
  func.func @actor_critic_kernel(%arg0: i32, %arg1: memref<128x64xf32, #tpu.memory_space<vmem>>, %arg2: memref<128x16xf32, #tpu.memory_space<vmem>>, %arg3: memref<16x32xf32, #tpu.memory_space<vmem>>, %arg4: memref<1x32xf32, #tpu.memory_space<vmem>>, %arg5: memref<32x32xf32, #tpu.memory_space<vmem>>, %arg6: memref<1x32xf32, #tpu.memory_space<vmem>>, %arg7: memref<32x128xf32, #tpu.memory_space<vmem>>, %arg8: memref<1x128xf32, #tpu.memory_space<vmem>>, %arg9: memref<64x128xf32, #tpu.memory_space<vmem>>, %arg10: memref<128x128xf32, #tpu.memory_space<vmem>>, %arg11: memref<1x128xf32, #tpu.memory_space<vmem>>, %arg12: memref<128x128xf32, #tpu.memory_space<vmem>>, %arg13: memref<1x128xf32, #tpu.memory_space<vmem>>, %arg14: memref<128x128xf32, #tpu.memory_space<vmem>>, %arg15: memref<1x128xf32, #tpu.memory_space<vmem>>, %arg16: memref<128x128xf32, #tpu.memory_space<vmem>>) attributes {dimension_semantics = [#tpu.dimension_semantics<parallel>], iteration_bounds = array<i64: 2>, scalar_prefetch = 0 : i64, scratch_operands = 0 : i64, tpu.core_type = #tpu.core_type<tc>, window_params = [{transform_indices = @transform_0, window_bounds = array<i64: 128, 64>}, {transform_indices = @transform_1, window_bounds = array<i64: 128, 16>}, {pipeline_mode = #tpu.pipeline_mode<synchronous>, transform_indices = @transform_2, window_bounds = array<i64: 16, 32>}, {pipeline_mode = #tpu.pipeline_mode<synchronous>, transform_indices = @transform_3, window_bounds = array<i64: 1, 32>}, {pipeline_mode = #tpu.pipeline_mode<synchronous>, transform_indices = @transform_4, window_bounds = array<i64: 32, 32>}, {pipeline_mode = #tpu.pipeline_mode<synchronous>, transform_indices = @transform_5, window_bounds = array<i64: 1, 32>}, {pipeline_mode = #tpu.pipeline_mode<synchronous>, transform_indices = @transform_6, window_bounds = array<i64: 32, 128>}, {pipeline_mode = #tpu.pipeline_mode<synchronous>, transform_indices = @transform_7, window_bounds = array<i64: 1, 128>}, {pipeline_mode = #tpu.pipeline_mode<synchronous>, transform_indices = @transform_8, window_bounds = array<i64: 64, 128>}, {pipeline_mode = #tpu.pipeline_mode<synchronous>, transform_indices = @transform_9, window_bounds = array<i64: 128, 128>}, {pipeline_mode = #tpu.pipeline_mode<synchronous>, transform_indices = @transform_10, window_bounds = array<i64: 1, 128>}, {pipeline_mode = #tpu.pipeline_mode<synchronous>, transform_indices = @transform_11, window_bounds = array<i64: 128, 128>}, {pipeline_mode = #tpu.pipeline_mode<synchronous>, transform_indices = @transform_12, window_bounds = array<i64: 1, 128>}, {pipeline_mode = #tpu.pipeline_mode<synchronous>, transform_indices = @transform_13, window_bounds = array<i64: 128, 128>}, {pipeline_mode = #tpu.pipeline_mode<synchronous>, transform_indices = @transform_14, window_bounds = array<i64: 1, 128>}, {transform_indices = @transform_15, window_bounds = array<i64: 128, 128>}]} {
    %c0 = arith.constant 0 : index
    %c0_0 = arith.constant 0 : index
    %0 = vector.load %arg2[%c0, %c0_0] : memref<128x16xf32, #tpu.memory_space<vmem>>, vector<128x16xf32>
    %c0_1 = arith.constant 0 : index
    %c0_2 = arith.constant 0 : index
    %1 = vector.load %arg3[%c0_1, %c0_2] : memref<16x32xf32, #tpu.memory_space<vmem>>, vector<16x32xf32>
    %cst = arith.constant dense<0.000000e+00> : vector<128x32xf32>
    %2 = tpu.matmul %0, %1, %cst {dimension_numbers = #tpu.dot_dimension_numbers<[1], [0], [0], [1], [0, 0, 1, 1], [], []>} : vector<128x16xf32>, vector<16x32xf32>, vector<128x32xf32> -> vector<128x32xf32>
    %c0_3 = arith.constant 0 : index
    %c0_4 = arith.constant 0 : index
    %3 = vector.load %arg4[%c0_3, %c0_4] : memref<1x32xf32, #tpu.memory_space<vmem>>, vector<1x32xf32>
    %4 = vector.broadcast %3 : vector<1x32xf32> to vector<128x32xf32>
    %5 = arith.addf %2, %4 : vector<128x32xf32>
    %cst_5 = arith.constant 0.000000e+00 : f32
    %6 = vector.broadcast %cst_5 : f32 to vector<128x32xf32>
    %7 = arith.cmpf ogt, %5, %6 : vector<128x32xf32>
    %8 = math.exp %5 : vector<128x32xf32>
    %cst_6 = arith.constant 1.000000e+00 : f32
    %9 = vector.broadcast %cst_6 : f32 to vector<128x32xf32>
    %10 = arith.subf %8, %9 : vector<128x32xf32>
    %11 = arith.select %7, %5, %10 : vector<128x32xi1>, vector<128x32xf32>
    %c0_7 = arith.constant 0 : index
    %c0_8 = arith.constant 0 : index
    %12 = vector.load %arg5[%c0_7, %c0_8] : memref<32x32xf32, #tpu.memory_space<vmem>>, vector<32x32xf32>
    %cst_9 = arith.constant dense<0.000000e+00> : vector<128x32xf32>
    %13 = tpu.matmul %11, %12, %cst_9 {dimension_numbers = #tpu.dot_dimension_numbers<[1], [0], [0], [1], [0, 0, 1, 1], [], []>} : vector<128x32xf32>, vector<32x32xf32>, vector<128x32xf32> -> vector<128x32xf32>
    %c0_10 = arith.constant 0 : index
    %c0_11 = arith.constant 0 : index
    %14 = vector.load %arg6[%c0_10, %c0_11] : memref<1x32xf32, #tpu.memory_space<vmem>>, vector<1x32xf32>
    %15 = vector.broadcast %14 : vector<1x32xf32> to vector<128x32xf32>
    %16 = arith.addf %13, %15 : vector<128x32xf32>
    %cst_12 = arith.constant 0.000000e+00 : f32
    %17 = vector.broadcast %cst_12 : f32 to vector<128x32xf32>
    %18 = arith.cmpf ogt, %16, %17 : vector<128x32xf32>
    %19 = math.exp %16 : vector<128x32xf32>
    %cst_13 = arith.constant 1.000000e+00 : f32
    %20 = vector.broadcast %cst_13 : f32 to vector<128x32xf32>
    %21 = arith.subf %19, %20 : vector<128x32xf32>
    %22 = arith.select %18, %16, %21 : vector<128x32xi1>, vector<128x32xf32>
    %c0_14 = arith.constant 0 : index
    %c0_15 = arith.constant 0 : index
    %23 = vector.load %arg7[%c0_14, %c0_15] : memref<32x128xf32, #tpu.memory_space<vmem>>, vector<32x128xf32>
    %cst_16 = arith.constant dense<0.000000e+00> : vector<128x128xf32>
    %24 = tpu.matmul %22, %23, %cst_16 {dimension_numbers = #tpu.dot_dimension_numbers<[1], [0], [0], [1], [0, 0, 1, 1], [], []>} : vector<128x32xf32>, vector<32x128xf32>, vector<128x128xf32> -> vector<128x128xf32>
    %c0_17 = arith.constant 0 : index
    %c0_18 = arith.constant 0 : index
    %25 = vector.load %arg8[%c0_17, %c0_18] : memref<1x128xf32, #tpu.memory_space<vmem>>, vector<1x128xf32>
    %26 = vector.broadcast %25 : vector<1x128xf32> to vector<128x128xf32>
    %27 = arith.addf %24, %26 : vector<128x128xf32>
    %c0_19 = arith.constant 0 : index
    %c0_20 = arith.constant 0 : index
    %28 = vector.load %arg1[%c0_19, %c0_20] : memref<128x64xf32, #tpu.memory_space<vmem>>, vector<128x64xf32>
    %c0_21 = arith.constant 0 : index
    %c0_22 = arith.constant 0 : index
    %29 = vector.load %arg9[%c0_21, %c0_22] : memref<64x128xf32, #tpu.memory_space<vmem>>, vector<64x128xf32>
    %cst_23 = arith.constant dense<0.000000e+00> : vector<128x128xf32>
    %30 = tpu.matmul %28, %29, %cst_23 {dimension_numbers = #tpu.dot_dimension_numbers<[1], [0], [0], [1], [0, 0, 1, 1], [], []>} : vector<128x64xf32>, vector<64x128xf32>, vector<128x128xf32> -> vector<128x128xf32>
    %c0_24 = arith.constant 0 : index
    %c0_25 = arith.constant 0 : index
    %31 = vector.load %arg10[%c0_24, %c0_25] : memref<128x128xf32, #tpu.memory_space<vmem>>, vector<128x128xf32>
    %cst_26 = arith.constant dense<0.000000e+00> : vector<128x128xf32>
    %32 = tpu.matmul %27, %31, %cst_26 {dimension_numbers = #tpu.dot_dimension_numbers<[1], [0], [0], [1], [0, 0, 1, 1], [], []>} : vector<128x128xf32>, vector<128x128xf32>, vector<128x128xf32> -> vector<128x128xf32>
    %33 = arith.addf %30, %32 : vector<128x128xf32>
    %c0_27 = arith.constant 0 : index
    %c0_28 = arith.constant 0 : index
    %34 = vector.load %arg11[%c0_27, %c0_28] : memref<1x128xf32, #tpu.memory_space<vmem>>, vector<1x128xf32>
    %35 = vector.broadcast %34 : vector<1x128xf32> to vector<128x128xf32>
    %36 = arith.addf %33, %35 : vector<128x128xf32>
    %cst_29 = arith.constant 0.000000e+00 : f32
    %37 = vector.broadcast %cst_29 : f32 to vector<128x128xf32>
    %38 = arith.cmpf ogt, %36, %37 : vector<128x128xf32>
    %39 = math.exp %36 : vector<128x128xf32>
    %cst_30 = arith.constant 1.000000e+00 : f32
    %40 = vector.broadcast %cst_30 : f32 to vector<128x128xf32>
    %41 = arith.subf %39, %40 : vector<128x128xf32>
    %42 = arith.select %38, %36, %41 : vector<128x128xi1>, vector<128x128xf32>
    %c0_31 = arith.constant 0 : index
    %c0_32 = arith.constant 0 : index
    %43 = vector.load %arg12[%c0_31, %c0_32] : memref<128x128xf32, #tpu.memory_space<vmem>>, vector<128x128xf32>
    %cst_33 = arith.constant dense<0.000000e+00> : vector<128x128xf32>
    %44 = tpu.matmul %42, %43, %cst_33 {dimension_numbers = #tpu.dot_dimension_numbers<[1], [0], [0], [1], [0, 0, 1, 1], [], []>} : vector<128x128xf32>, vector<128x128xf32>, vector<128x128xf32> -> vector<128x128xf32>
    %c0_34 = arith.constant 0 : index
    %c0_35 = arith.constant 0 : index
    %45 = vector.load %arg13[%c0_34, %c0_35] : memref<1x128xf32, #tpu.memory_space<vmem>>, vector<1x128xf32>
    %46 = vector.broadcast %45 : vector<1x128xf32> to vector<128x128xf32>
    %47 = arith.addf %44, %46 : vector<128x128xf32>
    %cst_36 = arith.constant 0.000000e+00 : f32
    %48 = vector.broadcast %cst_36 : f32 to vector<128x128xf32>
    %49 = arith.cmpf ogt, %47, %48 : vector<128x128xf32>
    %50 = math.exp %47 : vector<128x128xf32>
    %cst_37 = arith.constant 1.000000e+00 : f32
    %51 = vector.broadcast %cst_37 : f32 to vector<128x128xf32>
    %52 = arith.subf %50, %51 : vector<128x128xf32>
    %53 = arith.select %49, %47, %52 : vector<128x128xi1>, vector<128x128xf32>
    %c0_38 = arith.constant 0 : index
    %c0_39 = arith.constant 0 : index
    %54 = vector.load %arg14[%c0_38, %c0_39] : memref<128x128xf32, #tpu.memory_space<vmem>>, vector<128x128xf32>
    %cst_40 = arith.constant dense<0.000000e+00> : vector<128x128xf32>
    %55 = tpu.matmul %53, %54, %cst_40 {dimension_numbers = #tpu.dot_dimension_numbers<[1], [0], [0], [1], [0, 0, 1, 1], [], []>} : vector<128x128xf32>, vector<128x128xf32>, vector<128x128xf32> -> vector<128x128xf32>
    %c0_41 = arith.constant 0 : index
    %c0_42 = arith.constant 0 : index
    %56 = vector.load %arg15[%c0_41, %c0_42] : memref<1x128xf32, #tpu.memory_space<vmem>>, vector<1x128xf32>
    %57 = vector.broadcast %56 : vector<1x128xf32> to vector<128x128xf32>
    %58 = arith.addf %55, %57 : vector<128x128xf32>
    %59 = tpu.iota {dimensions = array<i32: 1>} : vector<128x128xi32>
    %c8_i32 = arith.constant 8 : i32
    %60 = vector.broadcast %c8_i32 : i32 to vector<128x128xi32>
    %61 = arith.cmpi slt, %59, %60 : vector<128x128xi32>
    %62 = tpu.weird %58 : vector<128x128xf32> -> vector<128x128xi1>
    %cst_43 = arith.constant dense<true> : vector<128x128xi1>
    %63 = arith.xori %62, %cst_43 : vector<128x128xi1>
    %cst_44 = arith.constant dense<true> : vector<128x128xi1>
    %64 = arith.xori %63, %cst_44 : vector<128x128xi1>
    %65 = arith.andi %61, %64 : vector<128x128xi1>
    %cst_45 = arith.constant 0.000000e+00 : f32
    %66 = vector.broadcast %cst_45 : f32 to vector<128x128xf32>
    %67 = arith.select %65, %66, %58 : vector<128x128xi1>, vector<128x128xf32>
    %68 = arith.addf %67, %27 : vector<128x128xf32>
    %c0_46 = arith.constant 0 : index
    %c0_47 = arith.constant 0 : index
    %69 = vector.load %arg16[%c0_46, %c0_47] : memref<128x128xf32, #tpu.memory_space<vmem>>, vector<128x128xf32>
    tpu.vector_store %arg16[%c0_46, %c0_47], %68 {strides = array<i32>} : memref<128x128xf32, #tpu.memory_space<vmem>>, vector<128x128xf32>,
    return
  }
  func.func @transform_0(%arg0: i32) -> (i32, i32) {
    %c0_i32 = arith.constant 0 : i32
    %c0_i32_0 = arith.constant 0 : i32
    return %arg0, %c0_i32 : i32, i32
  }
  func.func @transform_1(%arg0: i32) -> (i32, i32) {
    %c0_i32 = arith.constant 0 : i32
    %c0_i32_0 = arith.constant 0 : i32
    return %arg0, %c0_i32 : i32, i32
  }
  func.func @transform_2(%arg0: i32) -> (i32, i32) {
    %c0_i32 = arith.constant 0 : i32
    %c0_i32_0 = arith.constant 0 : i32
    %c0_i32_1 = arith.constant 0 : i32
    return %c0_i32, %c0_i32_0 : i32, i32
  }
  func.func @transform_3(%arg0: i32) -> (i32, i32) {
    %c0_i32 = arith.constant 0 : i32
    %c0_i32_0 = arith.constant 0 : i32
    %c0_i32_1 = arith.constant 0 : i32
    return %c0_i32, %c0_i32_0 : i32, i32
  }
  func.func @transform_4(%arg0: i32) -> (i32, i32) {
    %c0_i32 = arith.constant 0 : i32
    %c0_i32_0 = arith.constant 0 : i32
    %c0_i32_1 = arith.constant 0 : i32
    return %c0_i32, %c0_i32_0 : i32, i32
  }
  func.func @transform_5(%arg0: i32) -> (i32, i32) {
    %c0_i32 = arith.constant 0 : i32
    %c0_i32_0 = arith.constant 0 : i32
    %c0_i32_1 = arith.constant 0 : i32
    return %c0_i32, %c0_i32_0 : i32, i32
  }
  func.func @transform_6(%arg0: i32) -> (i32, i32) {
    %c0_i32 = arith.constant 0 : i32
    %c0_i32_0 = arith.constant 0 : i32
    %c0_i32_1 = arith.constant 0 : i32
    return %c0_i32, %c0_i32_0 : i32, i32
  }
  func.func @transform_7(%arg0: i32) -> (i32, i32) {
    %c0_i32 = arith.constant 0 : i32
    %c0_i32_0 = arith.constant 0 : i32
    %c0_i32_1 = arith.constant 0 : i32
    return %c0_i32, %c0_i32_0 : i32, i32
  }
  func.func @transform_8(%arg0: i32) -> (i32, i32) {
    %c0_i32 = arith.constant 0 : i32
    %c0_i32_0 = arith.constant 0 : i32
    %c0_i32_1 = arith.constant 0 : i32
    return %c0_i32, %c0_i32_0 : i32, i32
  }
  func.func @transform_9(%arg0: i32) -> (i32, i32) {
    %c0_i32 = arith.constant 0 : i32
    %c0_i32_0 = arith.constant 0 : i32
    %c0_i32_1 = arith.constant 0 : i32
    return %c0_i32, %c0_i32_0 : i32, i32
  }
  func.func @transform_10(%arg0: i32) -> (i32, i32) {
    %c0_i32 = arith.constant 0 : i32
    %c0_i32_0 = arith.constant 0 : i32
    %c0_i32_1 = arith.constant 0 : i32
    return %c0_i32, %c0_i32_0 : i32, i32
  }
  func.func @transform_11(%arg0: i32) -> (i32, i32) {
    %c0_i32 = arith.constant 0 : i32
    %c0_i32_0 = arith.constant 0 : i32
    %c0_i32_1 = arith.constant 0 : i32
    return %c0_i32, %c0_i32_0 : i32, i32
  }
  func.func @transform_12(%arg0: i32) -> (i32, i32) {
    %c0_i32 = arith.constant 0 : i32
    %c0_i32_0 = arith.constant 0 : i32
    %c0_i32_1 = arith.constant 0 : i32
    return %c0_i32, %c0_i32_0 : i32, i32
  }
  func.func @transform_13(%arg0: i32) -> (i32, i32) {
    %c0_i32 = arith.constant 0 : i32
    %c0_i32_0 = arith.constant 0 : i32
    %c0_i32_1 = arith.constant 0 : i32
    return %c0_i32, %c0_i32_0 : i32, i32
  }
  func.func @transform_14(%arg0: i32) -> (i32, i32) {
    %c0_i32 = arith.constant 0 : i32
    %c0_i32_0 = arith.constant 0 : i32
    %c0_i32_1 = arith.constant 0 : i32
    return %c0_i32, %c0_i32_0 : i32, i32
  }
  func.func @transform_15(%arg0: i32) -> (i32, i32) {
    %c0_i32 = arith.constant 0 : i32
    %c0_i32_0 = arith.constant 0 : i32
    return %arg0, %c0_i32 : i32, i32
  }
}

</mosaic_0001>

<llo_original>
// kernel: tpu_custom_call.1
$region0: #{tpu_custom_call.1}
  #allocation0 [shape = 'u32[]', space=smem, size = 0x4, offset = 0x4, fixed_abs, tag = 'smem constant byte address 0x4 - core index']
  #allocation1 [shape = 'u32[144,128]{1,0:T(1,128)}', space=vmem, size = 0x12000, scoped, tag = 'internal scratch']
  %s0 = inlined_call_operand.vmem [shape: f32[256,64], index: 0, kind: input, shape index: {}]
  %s1 = inlined_call_operand.vmem [shape: f32[256,16], index: 1, kind: input, shape index: {}]
  %s2 = inlined_call_operand.vmem [shape: f32[16,32], index: 2, kind: input, shape index: {}]
  %s3 = inlined_call_operand.vmem [shape: f32[1,32], index: 3, kind: input, shape index: {}]
  %s4 = inlined_call_operand.vmem [shape: f32[32,32], index: 4, kind: input, shape index: {}]
  %s5 = inlined_call_operand.vmem [shape: f32[1,32], index: 5, kind: input, shape index: {}]
  %s6 = inlined_call_operand.vmem [shape: f32[32,128], index: 6, kind: input, shape index: {}]
  %s7 = inlined_call_operand.vmem [shape: f32[1,128], index: 7, kind: input, shape index: {}]
  %s8 = inlined_call_operand.vmem [shape: f32[64,128], index: 8, kind: input, shape index: {}]
  %s9 = inlined_call_operand.vmem [shape: f32[128,128], index: 9, kind: input, shape index: {}]
  %s10 = inlined_call_operand.vmem [shape: f32[1,128], index: 10, kind: input, shape index: {}]
  %s11 = inlined_call_operand.vmem [shape: f32[128,128], index: 11, kind: input, shape index: {}]
  %s12 = inlined_call_operand.vmem [shape: f32[1,128], index: 12, kind: input, shape index: {}]
  %s13 = inlined_call_operand.vmem [shape: f32[128,128], index: 13, kind: input, shape index: {}]
  %s14 = inlined_call_operand.vmem [shape: f32[1,128], index: 14, kind: input, shape index: {}]
  %s15 = inlined_call_operand.hbm [shape: f32[256,128], index: 15, kind: output, shape index: {}]
  %s16 = sld [smem:[#allocation0]]
  $region93: #{tpu_custom_call.1} parent=0
    _
  %s18 = ssub.s32 1, %s16
  %s19 = scalar_select 0, %s18, %s16
  $region1: #{tpu_custom_call.1} parent=0
    #allocation2 [shape = 'u8[131072]{0}', space=vmem, size = 0x20000, scoped, tag = 'output window, operand 0']
    #allocation3 [shape = 's32[2]{0}', space=sflag, size = 0x8, scoped, tag = 'scoped memory for tpu_custom_call.1']
    %20 = vsyncpa [#allocation3], 0
    %s21 = scalar_lea.sflag [#allocation3], 1
    %22 = vsyncpa %s21, 0
    loop: start=0, step=1, limit=4
    $region2: #{tpu_custom_call.1} parent=1 // loop_pre_header
      _
    $region3: #{tpu_custom_call.1} parent=1 // loop_header
      %s24 = sphi 0, %s28
      %p25 = scmp.ge.s32.totalorder %s24, 4
      %s34 = sphi 0, %s36
      %s37 = sphi 0, %s34
      %s38 = sphi 0, %s37
      %s54 = sphi 0, %s38
      %s60 = sphi 0, %s62
      %s63 = sphi 0, %s60
      %s64 = sphi 0, %s63
      %s80 = sphi 0, %s64
      %s84 = sphi 0, %s84
      %s86 = sphi 0, %s84
      %s87 = sphi 0, %s86
      %s101 = sphi 0, %s87
      %s105 = sphi 0, %s105
      %s107 = sphi 0, %s105
      %s108 = sphi 0, %s107
      %s122 = sphi 0, %s108
      %s126 = sphi 0, %s126
      %s128 = sphi 0, %s126
      %s129 = sphi 0, %s128
      %s143 = sphi 0, %s129
      %s147 = sphi 0, %s147
      %s149 = sphi 0, %s147
      %s150 = sphi 0, %s149
      %s164 = sphi 0, %s150
      %s168 = sphi 0, %s168
      %s170 = sphi 0, %s168
      %s171 = sphi 0, %s170
      %s185 = sphi 0, %s171
      %s189 = sphi 0, %s189
      %s191 = sphi 0, %s189
      %s192 = sphi 0, %s191
      %s206 = sphi 0, %s192
      %s210 = sphi 0, %s210
      %s212 = sphi 0, %s210
      %s213 = sphi 0, %s212
      %s227 = sphi 0, %s213
      %s231 = sphi 0, %s231
      %s233 = sphi 0, %s231
      %s234 = sphi 0, %s233
      %s248 = sphi 0, %s234
      %s252 = sphi 0, %s252
      %s254 = sphi 0, %s252
      %s255 = sphi 0, %s254
      %s269 = sphi 0, %s255
      %s273 = sphi 0, %s273
      %s275 = sphi 0, %s273
      %s276 = sphi 0, %s275
      %s290 = sphi 0, %s276
      %s294 = sphi 0, %s294
      %s296 = sphi 0, %s294
      %s297 = sphi 0, %s296
      %s311 = sphi 0, %s297
      %s315 = sphi 0, %s315
      %s317 = sphi 0, %s315
      %s318 = sphi 0, %s317
      %s332 = sphi 0, %s318
      %s336 = sphi 0, %s336
      %s338 = sphi 0, %s336
      %s339 = sphi 0, %s338
      %s353 = sphi 0, %s339
      %s359 = sphi 0, %s361
      %s362 = sphi 0, %s359
      %s363 = sphi 0, %s362
      %s379 = sphi 0, %s363
    $region4: #{tpu_custom_call.1} parent=1 // loop_header_branch
      %27 = sbr.rel (%p25) target = $region8
    $region5: #{tpu_custom_call.1} parent=1 // loop_body
      %s29 = ssub.s32 %s24, 1
      %s30 = ssub.s32 %s24, 2
      %s31 = sadd.s32 %s24, 1
      %s32 = ssub.s32 %s24, %s31
      %p33 = scmp.eq.s32.totalorder %s32, 0
      %s35 = sadd.s32 %s34, 1
      %s36 = scalar_select %p33, %s34, %s35
      %p39 = pneg %p33
      %p40 = scmp.eq.s32.totalorder %s24, 1
      %p41 = por %p39, %p40
      %p42 = scmp.ne.s32.totalorder %s34, %s37
      %p43 = scmp.eq.s32.totalorder %s24, 0
      %p44 = por %p42, %p43
      %p45 = scmp.ne.s32.totalorder %s34, %s37
      %p46 = scmp.eq.s32.totalorder %s29, 1
      %p47 = por %p45, %p46
      %p48 = scmp.ne.s32.totalorder %s37, %s38
      %p49 = scmp.eq.s32.totalorder %s29, 0
      %p50 = por %p48, %p49
      %p51 = scmp.ne.s32.totalorder %s37, %s38
      %p52 = scmp.eq.s32.totalorder %s30, 1
      %p53 = por %p51, %p52
      %p55 = scmp.ne.s32.totalorder %s38, %s54
      %p56 = scmp.eq.s32.totalorder %s30, 0
      %p57 = por %p55, %p56
      %s58 = ssub.s32 %s24, %s31
      %p59 = scmp.eq.s32.totalorder %s58, 0
      %s61 = sadd.s32 %s60, 1
      %s62 = scalar_select %p59, %s60, %s61
      %p65 = pneg %p59
      %p66 = scmp.eq.s32.totalorder %s24, 1
      %p67 = por %p65, %p66
      %p68 = scmp.ne.s32.totalorder %s60, %s63
      %p69 = scmp.eq.s32.totalorder %s24, 0
      %p70 = por %p68, %p69
      %p71 = scmp.ne.s32.totalorder %s60, %s63
      %p72 = scmp.eq.s32.totalorder %s29, 1
      %p73 = por %p71, %p72
      %p74 = scmp.ne.s32.totalorder %s63, %s64
      %p75 = scmp.eq.s32.totalorder %s29, 0
      %p76 = por %p74, %p75
      %p77 = scmp.ne.s32.totalorder %s63, %s64
      %p78 = scmp.eq.s32.totalorder %s30, 1
      %p79 = por %p77, %p78
      %p81 = scmp.ne.s32.totalorder %s64, %s80
      %p82 = scmp.eq.s32.totalorder %s30, 0
      %p83 = por %p81, %p82
      %s85 = sadd.s32 %s84, 1
      %p88 = scmp.eq.s32.totalorder %s24, 1
      %p89 = scmp.ne.s32.totalorder %s84, %s86
      %p90 = scmp.eq.s32.totalorder %s24, 0
      %p91 = por %p89, %p90
      %p92 = scmp.ne.s32.totalorder %s84, %s86
      %p93 = scmp.eq.s32.totalorder %s29, 1
      %p94 = por %p92, %p93
      %p95 = scmp.ne.s32.totalorder %s86, %s87
      %p96 = scmp.eq.s32.totalorder %s29, 0
      %p97 = por %p95, %p96
      %p98 = scmp.ne.s32.totalorder %s86, %s87
      %p99 = scmp.eq.s32.totalorder %s30, 1
      %p100 = por %p98, %p99
      %p102 = scmp.ne.s32.totalorder %s87, %s101
      %p103 = scmp.eq.s32.totalorder %s30, 0
      %p104 = por %p102, %p103
      %s106 = sadd.s32 %s105, 1
      %p109 = scmp.eq.s32.totalorder %s24, 1
      %p110 = scmp.ne.s32.totalorder %s105, %s107
      %p111 = scmp.eq.s32.totalorder %s24, 0
      %p112 = por %p110, %p111
      %p113 = scmp.ne.s32.totalorder %s105, %s107
      %p114 = scmp.eq.s32.totalorder %s29, 1
      %p115 = por %p113, %p114
      %p116 = scmp.ne.s32.totalorder %s107, %s108
      %p117 = scmp.eq.s32.totalorder %s29, 0
      %p118 = por %p116, %p117
      %p119 = scmp.ne.s32.totalorder %s107, %s108
      %p120 = scmp.eq.s32.totalorder %s30, 1
      %p121 = por %p119, %p120
      %p123 = scmp.ne.s32.totalorder %s108, %s122
      %p124 = scmp.eq.s32.totalorder %s30, 0
      %p125 = por %p123, %p124
      %s127 = sadd.s32 %s126, 1
      %p130 = scmp.eq.s32.totalorder %s24, 1
      %p131 = scmp.ne.s32.totalorder %s126, %s128
      %p132 = scmp.eq.s32.totalorder %s24, 0
      %p133 = por %p131, %p132
      %p134 = scmp.ne.s32.totalorder %s126, %s128
      %p135 = scmp.eq.s32.totalorder %s29, 1
      %p136 = por %p134, %p135
      %p137 = scmp.ne.s32.totalorder %s128, %s129
      %p138 = scmp.eq.s32.totalorder %s29, 0
      %p139 = por %p137, %p138
      %p140 = scmp.ne.s32.totalorder %s128, %s129
      %p141 = scmp.eq.s32.totalorder %s30, 1
      %p142 = por %p140, %p141
      %p144 = scmp.ne.s32.totalorder %s129, %s143
      %p145 = scmp.eq.s32.totalorder %s30, 0
      %p146 = por %p144, %p145
      %s148 = sadd.s32 %s147, 1
      %p151 = scmp.eq.s32.totalorder %s24, 1
      %p152 = scmp.ne.s32.totalorder %s147, %s149
      %p153 = scmp.eq.s32.totalorder %s24, 0
      %p154 = por %p152, %p153
      %p155 = scmp.ne.s32.totalorder %s147, %s149
      %p156 = scmp.eq.s32.totalorder %s29, 1
      %p157 = por %p155, %p156
      %p158 = scmp.ne.s32.totalorder %s149, %s150
      %p159 = scmp.eq.s32.totalorder %s29, 0
      %p160 = por %p158, %p159
      %p161 = scmp.ne.s32.totalorder %s149, %s150
      %p162 = scmp.eq.s32.totalorder %s30, 1
      %p163 = por %p161, %p162
      %p165 = scmp.ne.s32.totalorder %s150, %s164
      %p166 = scmp.eq.s32.totalorder %s30, 0
      %p167 = por %p165, %p166
      %s169 = sadd.s32 %s168, 1
      %p172 = scmp.eq.s32.totalorder %s24, 1
      %p173 = scmp.ne.s32.totalorder %s168, %s170
      %p174 = scmp.eq.s32.totalorder %s24, 0
      %p175 = por %p173, %p174
      %p176 = scmp.ne.s32.totalorder %s168, %s170
      %p177 = scmp.eq.s32.totalorder %s29, 1
      %p178 = por %p176, %p177
      %p179 = scmp.ne.s32.totalorder %s170, %s171
      %p180 = scmp.eq.s32.totalorder %s29, 0
      %p181 = por %p179, %p180
      %p182 = scmp.ne.s32.totalorder %s170, %s171
      %p183 = scmp.eq.s32.totalorder %s30, 1
      %p184 = por %p182, %p183
      %p186 = scmp.ne.s32.totalorder %s171, %s185
      %p187 = scmp.eq.s32.totalorder %s30, 0
      %p188 = por %p186, %p187
      %s190 = sadd.s32 %s189, 1
      %p193 = scmp.eq.s32.totalorder %s24, 1
      %p194 = scmp.ne.s32.totalorder %s189, %s191
      %p195 = scmp.eq.s32.totalorder %s24, 0
      %p196 = por %p194, %p195
      %p197 = scmp.ne.s32.totalorder %s189, %s191
      %p198 = scmp.eq.s32.totalorder %s29, 1
      %p199 = por %p197, %p198
      %p200 = scmp.ne.s32.totalorder %s191, %s192
      %p201 = scmp.eq.s32.totalorder %s29, 0
      %p202 = por %p200, %p201
      %p203 = scmp.ne.s32.totalorder %s191, %s192
      %p204 = scmp.eq.s32.totalorder %s30, 1
      %p205 = por %p203, %p204
      %p207 = scmp.ne.s32.totalorder %s192, %s206
      %p208 = scmp.eq.s32.totalorder %s30, 0
      %p209 = por %p207, %p208
      %s211 = sadd.s32 %s210, 1
      %p214 = scmp.eq.s32.totalorder %s24, 1
      %p215 = scmp.ne.s32.totalorder %s210, %s212
      %p216 = scmp.eq.s32.totalorder %s24, 0
      %p217 = por %p215, %p216
      %p218 = scmp.ne.s32.totalorder %s210, %s212
      %p219 = scmp.eq.s32.totalorder %s29, 1
      %p220 = por %p218, %p219
      %p221 = scmp.ne.s32.totalorder %s212, %s213
      %p222 = scmp.eq.s32.totalorder %s29, 0
      %p223 = por %p221, %p222
      %p224 = scmp.ne.s32.totalorder %s212, %s213
      %p225 = scmp.eq.s32.totalorder %s30, 1
      %p226 = por %p224, %p225
      %p228 = scmp.ne.s32.totalorder %s213, %s227
      %p229 = scmp.eq.s32.totalorder %s30, 0
      %p230 = por %p228, %p229
      %s232 = sadd.s32 %s231, 1
      %p235 = scmp.eq.s32.totalorder %s24, 1
      %p236 = scmp.ne.s32.totalorder %s231, %s233
      %p237 = scmp.eq.s32.totalorder %s24, 0
      %p238 = por %p236, %p237
      %p239 = scmp.ne.s32.totalorder %s231, %s233
      %p240 = scmp.eq.s32.totalorder %s29, 1
      %p241 = por %p239, %p240
      %p242 = scmp.ne.s32.totalorder %s233, %s234
      %p243 = scmp.eq.s32.totalorder %s29, 0
      %p244 = por %p242, %p243
      %p245 = scmp.ne.s32.totalorder %s233, %s234
      %p246 = scmp.eq.s32.totalorder %s30, 1
      %p247 = por %p245, %p246
      %p249 = scmp.ne.s32.totalorder %s234, %s248
      %p250 = scmp.eq.s32.totalorder %s30, 0
      %p251 = por %p249, %p250
      %s253 = sadd.s32 %s252, 1
      %p256 = scmp.eq.s32.totalorder %s24, 1
      %p257 = scmp.ne.s32.totalorder %s252, %s254
      %p258 = scmp.eq.s32.totalorder %s24, 0
      %p259 = por %p257, %p258
      %p260 = scmp.ne.s32.totalorder %s252, %s254
      %p261 = scmp.eq.s32.totalorder %s29, 1
      %p262 = por %p260, %p261
      %p263 = scmp.ne.s32.totalorder %s254, %s255
      %p264 = scmp.eq.s32.totalorder %s29, 0
      %p265 = por %p263, %p264
      %p266 = scmp.ne.s32.totalorder %s254, %s255
      %p267 = scmp.eq.s32.totalorder %s30, 1
      %p268 = por %p266, %p267
      %p270 = scmp.ne.s32.totalorder %s255, %s269
      %p271 = scmp.eq.s32.totalorder %s30, 0
      %p272 = por %p270, %p271
      %s274 = sadd.s32 %s273, 1
      %p277 = scmp.eq.s32.totalorder %s24, 1
      %p278 = scmp.ne.s32.totalorder %s273, %s275
      %p279 = scmp.eq.s32.totalorder %s24, 0
      %p280 = por %p278, %p279
      %p281 = scmp.ne.s32.totalorder %s273, %s275
      %p282 = scmp.eq.s32.totalorder %s29, 1
      %p283 = por %p281, %p282
      %p284 = scmp.ne.s32.totalorder %s275, %s276
      %p285 = scmp.eq.s32.totalorder %s29, 0
      %p286 = por %p284, %p285
      %p287 = scmp.ne.s32.totalorder %s275, %s276
      %p288 = scmp.eq.s32.totalorder %s30, 1
      %p289 = por %p287, %p288
      %p291 = scmp.ne.s32.totalorder %s276, %s290
      %p292 = scmp.eq.s32.totalorder %s30, 0
      %p293 = por %p291, %p292
      %s295 = sadd.s32 %s294, 1
      %p298 = scmp.eq.s32.totalorder %s24, 1
      %p299 = scmp.ne.s32.totalorder %s294, %s296
      %p300 = scmp.eq.s32.totalorder %s24, 0
      %p301 = por %p299, %p300
      %p302 = scmp.ne.s32.totalorder %s294, %s296
      %p303 = scmp.eq.s32.totalorder %s29, 1
      %p304 = por %p302, %p303
      %p305 = scmp.ne.s32.totalorder %s296, %s297
      %p306 = scmp.eq.s32.totalorder %s29, 0
      %p307 = por %p305, %p306
      %p308 = scmp.ne.s32.totalorder %s296, %s297
      %p309 = scmp.eq.s32.totalorder %s30, 1
      %p310 = por %p308, %p309
      %p312 = scmp.ne.s32.totalorder %s297, %s311
      %p313 = scmp.eq.s32.totalorder %s30, 0
      %p314 = por %p312, %p313
      %s316 = sadd.s32 %s315, 1
      %p319 = scmp.eq.s32.totalorder %s24, 1
      %p320 = scmp.ne.s32.totalorder %s315, %s317
      %p321 = scmp.eq.s32.totalorder %s24, 0
      %p322 = por %p320, %p321
      %p323 = scmp.ne.s32.totalorder %s315, %s317
      %p324 = scmp.eq.s32.totalorder %s29, 1
      %p325 = por %p323, %p324
      %p326 = scmp.ne.s32.totalorder %s317, %s318
      %p327 = scmp.eq.s32.totalorder %s29, 0
      %p328 = por %p326, %p327
      %p329 = scmp.ne.s32.totalorder %s317, %s318
      %p330 = scmp.eq.s32.totalorder %s30, 1
      %p331 = por %p329, %p330
      %p333 = scmp.ne.s32.totalorder %s318, %s332
      %p334 = scmp.eq.s32.totalorder %s30, 0
      %p335 = por %p333, %p334
      %s337 = sadd.s32 %s336, 1
      %p340 = scmp.eq.s32.totalorder %s24, 1
      %p341 = scmp.ne.s32.totalorder %s336, %s338
      %p342 = scmp.eq.s32.totalorder %s24, 0
      %p343 = por %p341, %p342
      %p344 = scmp.ne.s32.totalorder %s336, %s338
      %p345 = scmp.eq.s32.totalorder %s29, 1
      %p346 = por %p344, %p345
      %p347 = scmp.ne.s32.totalorder %s338, %s339
      %p348 = scmp.eq.s32.totalorder %s29, 0
      %p349 = por %p347, %p348
      %p350 = scmp.ne.s32.totalorder %s338, %s339
      %p351 = scmp.eq.s32.totalorder %s30, 1
      %p352 = por %p350, %p351
      %p354 = scmp.ne.s32.totalorder %s339, %s353
      %p355 = scmp.eq.s32.totalorder %s30, 0
      %p356 = por %p354, %p355
      %s357 = ssub.s32 %s24, %s31
      %p358 = scmp.eq.s32.totalorder %s357, 0
      %s360 = sadd.s32 %s359, 1
      %s361 = scalar_select %p358, %s359, %s360
      %p364 = pneg %p358
      %p365 = scmp.eq.s32.totalorder %s24, 1
      %p366 = por %p364, %p365
      %p367 = scmp.ne.s32.totalorder %s359, %s362
      %p368 = scmp.eq.s32.totalorder %s24, 0
      %p369 = por %p367, %p368
      %p370 = scmp.ne.s32.totalorder %s359, %s362
      %p371 = scmp.eq.s32.totalorder %s29, 1
      %p372 = por %p370, %p371
      %p373 = scmp.ne.s32.totalorder %s362, %s363
      %p374 = scmp.eq.s32.totalorder %s29, 0
      %p375 = por %p373, %p374
      %p376 = scmp.ne.s32.totalorder %s362, %s363
      %p377 = scmp.eq.s32.totalorder %s30, 1
      %p378 = por %p376, %p377
      %p380 = scmp.ne.s32.totalorder %s363, %s379
      %p381 = scmp.eq.s32.totalorder %s30, 0
      %p382 = por %p380, %p381
      %p383 = scmp.le.s32.totalorder 1, %s24
      %p384 = scmp.lt.s32.totalorder %s24, 3
      %p385 = pnand %p383, %p384
      %p386 = pneg %p385
      // Predicated region
      $region9: #{tpu_custom_call.1} parent=5 // pred_check
        _
      $region10: #{tpu_custom_call.1} parent=5 // pred_check_branch
        %388 = sbr.rel (%p385) target = $region12
      $region11: #{tpu_custom_call.1} parent=5 // pred_region
        %s389 = ssub.s32 %s24, 1
        // Predicated region
        $region13: #{tpu_custom_call.1} parent=11 // pred_check
          %p390 = pneg %p97
        $region14: #{tpu_custom_call.1} parent=11 // pred_check_branch
          %392 = sbr.rel (%p390) target = $region16
        $region15: #{tpu_custom_call.1} parent=11 // pred_region
          _
        $region16: #{tpu_custom_call.1} parent=11 // pred_fallthru
          _
        // Predicated region
        $region17: #{tpu_custom_call.1} parent=11 // pred_check
          %p393 = pneg %p118
        $region18: #{tpu_custom_call.1} parent=11 // pred_check_branch
          %395 = sbr.rel (%p393) target = $region20
        $region19: #{tpu_custom_call.1} parent=11 // pred_region
          _
        $region20: #{tpu_custom_call.1} parent=11 // pred_fallthru
          _
        // Predicated region
        $region21: #{tpu_custom_call.1} parent=11 // pred_check
          %p396 = pneg %p139
        $region22: #{tpu_custom_call.1} parent=11 // pred_check_branch
          %398 = sbr.rel (%p396) target = $region24
        $region23: #{tpu_custom_call.1} parent=11 // pred_region
          _
        $region24: #{tpu_custom_call.1} parent=11 // pred_fallthru
          _
        // Predicated region
        $region25: #{tpu_custom_call.1} parent=11 // pred_check
          %p399 = pneg %p160
        $region26: #{tpu_custom_call.1} parent=11 // pred_check_branch
          %401 = sbr.rel (%p399) target = $region28
        $region27: #{tpu_custom_call.1} parent=11 // pred_region
          _
        $region28: #{tpu_custom_call.1} parent=11 // pred_fallthru
          _
        // Predicated region
        $region29: #{tpu_custom_call.1} parent=11 // pred_check
          %p402 = pneg %p181
        $region30: #{tpu_custom_call.1} parent=11 // pred_check_branch
          %404 = sbr.rel (%p402) target = $region32
        $region31: #{tpu_custom_call.1} parent=11 // pred_region
          _
        $region32: #{tpu_custom_call.1} parent=11 // pred_fallthru
          _
        // Predicated region
        $region33: #{tpu_custom_call.1} parent=11 // pred_check
          %p405 = pneg %p202
        $region34: #{tpu_custom_call.1} parent=11 // pred_check_branch
          %407 = sbr.rel (%p405) target = $region36
        $region35: #{tpu_custom_call.1} parent=11 // pred_region
          _
        $region36: #{tpu_custom_call.1} parent=11 // pred_fallthru
          _
        // Predicated region
        $region37: #{tpu_custom_call.1} parent=11 // pred_check
          %p408 = pneg %p223
        $region38: #{tpu_custom_call.1} parent=11 // pred_check_branch
          %410 = sbr.rel (%p408) target = $region40
        $region39: #{tpu_custom_call.1} parent=11 // pred_region
          _
        $region40: #{tpu_custom_call.1} parent=11 // pred_fallthru
          _
        // Predicated region
        $region41: #{tpu_custom_call.1} parent=11 // pred_check
          %p411 = pneg %p244
        $region42: #{tpu_custom_call.1} parent=11 // pred_check_branch
          %413 = sbr.rel (%p411) target = $region44
        $region43: #{tpu_custom_call.1} parent=11 // pred_region
          _
        $region44: #{tpu_custom_call.1} parent=11 // pred_fallthru
          _
        // Predicated region
        $region45: #{tpu_custom_call.1} parent=11 // pred_check
          %p414 = pneg %p265
        $region46: #{tpu_custom_call.1} parent=11 // pred_check_branch
          %416 = sbr.rel (%p414) target = $region48
        $region47: #{tpu_custom_call.1} parent=11 // pred_region
          _
        $region48: #{tpu_custom_call.1} parent=11 // pred_fallthru
          _
        // Predicated region
        $region49: #{tpu_custom_call.1} parent=11 // pred_check
          %p417 = pneg %p286
        $region50: #{tpu_custom_call.1} parent=11 // pred_check_branch
          %419 = sbr.rel (%p417) target = $region52
        $region51: #{tpu_custom_call.1} parent=11 // pred_region
          _
        $region52: #{tpu_custom_call.1} parent=11 // pred_fallthru
          _
        // Predicated region
        $region53: #{tpu_custom_call.1} parent=11 // pred_check
          %p420 = pneg %p307
        $region54: #{tpu_custom_call.1} parent=11 // pred_check_branch
          %422 = sbr.rel (%p420) target = $region56
        $region55: #{tpu_custom_call.1} parent=11 // pred_region
          _
        $region56: #{tpu_custom_call.1} parent=11 // pred_fallthru
          _
        // Predicated region
        $region57: #{tpu_custom_call.1} parent=11 // pred_check
          %p423 = pneg %p328
        $region58: #{tpu_custom_call.1} parent=11 // pred_check_branch
          %425 = sbr.rel (%p423) target = $region60
        $region59: #{tpu_custom_call.1} parent=11 // pred_region
          _
        $region60: #{tpu_custom_call.1} parent=11 // pred_fallthru
          _
        // Predicated region
        $region61: #{tpu_custom_call.1} parent=11 // pred_check
          %p426 = pneg %p349
        $region62: #{tpu_custom_call.1} parent=11 // pred_check_branch
          %428 = sbr.rel (%p426) target = $region64
        $region63: #{tpu_custom_call.1} parent=11 // pred_region
          _
        $region64: #{tpu_custom_call.1} parent=11 // pred_fallthru
          _
      $region12: #{tpu_custom_call.1} parent=5 // pred_fallthru
        _
      %p429 = scmp.lt.s32.totalorder %s24, 2
      // Predicated region
      $region65: #{tpu_custom_call.1} parent=5 // pred_check
        %p430 = pneg %p429
      $region66: #{tpu_custom_call.1} parent=5 // pred_check_branch
        %432 = sbr.rel (%p430) target = $region68
      $region67: #{tpu_custom_call.1} parent=5 // pred_region
        // Predicated region
        $region69: #{tpu_custom_call.1} parent=67 // pred_check
          %p433 = pneg %p44
        $region70: #{tpu_custom_call.1} parent=67 // pred_check_branch
          %435 = sbr.rel (%p433) target = $region72
        $region71: #{tpu_custom_call.1} parent=67 // pred_region
          %s436 = smul.u32 16, %s24
          %p437 = scmp.lt.s32.totalorder %s436, 31
          %s438 = scalar_select %p437, %s436, 31
          %s439 = smul.addr %s438, 8
          %s440 = scalar_lea.vmem %s0, %s439
          %s441 = smul.u32 16, %s24
        $region72: #{tpu_custom_call.1} parent=67 // pred_fallthru
          _
        // Predicated region
        $region73: #{tpu_custom_call.1} parent=67 // pred_check
          %p442 = pneg %p70
        $region74: #{tpu_custom_call.1} parent=67 // pred_check_branch
          %444 = sbr.rel (%p442) target = $region76
        $region75: #{tpu_custom_call.1} parent=67 // pred_region
          %s445 = smul.u32 16, %s24
          %p446 = scmp.lt.s32.totalorder %s445, 31
          %s447 = scalar_select %p446, %s445, 31
          %s448 = smul.addr %s447, 8
          %s449 = scalar_lea.vmem %s1, %s448
          %s450 = smul.u32 16, %s24
        $region76: #{tpu_custom_call.1} parent=67 // pred_fallthru
          _
      $region68: #{tpu_custom_call.1} parent=5 // pred_fallthru
        _
      %p451 = scmp.le.s32.totalorder 1, %s24
      %p452 = scmp.lt.s32.totalorder %s24, 3
      %p453 = pnand %p451, %p452
      %p454 = pneg %p453
      // Predicated region
      $region77: #{tpu_custom_call.1} parent=5 // pred_check
        _
      $region78: #{tpu_custom_call.1} parent=5 // pred_check_branch
        %456 = sbr.rel (%p453) target = $region80
      $region79: #{tpu_custom_call.1} parent=5 // pred_region
        %s457 = ssub.s32 %s24, 1
        %s458 = smul.u32 16, %s29
        %p459 = scmp.lt.s32.totalorder %s458, 31
        %s460 = scalar_select %p459, %s458, 31
        %s461 = smul.addr %s460, 8
        %s462 = scalar_lea.vmem %s0, %s461
        %p463 = pneg %p50
        %p464 = pneg %p47
        %s465 = smul.u32 16, %s29
        %p466 = scmp.lt.s32.totalorder %s465, 31
        %s467 = scalar_select %p466, %s465, 31
        %s468 = smul.addr %s467, 8
        %s469 = scalar_lea.vmem %s1, %s468
        %p470 = pneg %p76
        %p471 = pneg %p73
        %p472 = pneg %p97
        %p473 = pneg %p94
        %p474 = pneg %p118
        %p475 = pneg %p115
        %p476 = pneg %p139
        %p477 = pneg %p136
        %p478 = pneg %p160
        %p479 = pneg %p157
        %p480 = pneg %p181
        %p481 = pneg %p178
        %p482 = pneg %p202
        %p483 = pneg %p199
        %p484 = pneg %p223
        %p485 = pneg %p220
        %p486 = pneg %p244
        %p487 = pneg %p241
        %p488 = pneg %p265
        %p489 = pneg %p262
        %p490 = pneg %p286
        %p491 = pneg %p283
        %p492 = pneg %p307
        %p493 = pneg %p304
        %p494 = pneg %p328
        %p495 = pneg %p325
        %p496 = pneg %p349
        %p497 = pneg %p346
        %p498 = pneg %p375
        %p499 = pneg %p372
        %s500 = sand.u32 %s362, 1
        %s501 = scalar_lea.sflag [#allocation3], %s500
        %s502 = sand.u32 %s362, 1
        %s503 = smul.addr %s502, 128
        %s504 = scalar_lea.vmem [#allocation2], %s503
        %s505 = smul.u32 16, %s29
        %p506 = scmp.lt.s32.totalorder %s505, 31
        %s507 = scalar_select %p506, %s505, 31
        %s508 = smul.addr %s507, 8
        %s509 = scalar_lea.vmem %s0, %s508
        %s510 = smul.u32 16, %s29
        %s511 = smul.u32 16, %s29
        %p512 = scmp.lt.s32.totalorder %s511, 31
        %s513 = scalar_select %p512, %s511, 31
        %s514 = smul.addr %s513, 8
        %s515 = scalar_lea.vmem %s1, %s514
        %s516 = smul.u32 16, %s29
        %s517 = smul.u32 16, %s29
        %v518 = vld [vmem:[%s515] sm:$0xff]
        %v519 = vld [vmem:[%s515 + $0x8] sm:$0xff]
        %v520 = vld [vmem:[%s515 + $0x10] sm:$0xff]
        %v521 = vld [vmem:[%s515 + $0x18] sm:$0xff]
        %v522 = vld [vmem:[%s515 + $0x20] sm:$0xff]
        %v523 = vld [vmem:[%s515 + $0x28] sm:$0xff]
        %v524 = vld [vmem:[%s515 + $0x30] sm:$0xff]
        %v525 = vld [vmem:[%s515 + $0x38] sm:$0xff]
        %v526 = vld [vmem:[%s515 + $0x40] sm:$0xff]
        %v527 = vld [vmem:[%s515 + $0x48] sm:$0xff]
        %v528 = vld [vmem:[%s515 + $0x50] sm:$0xff]
        %v529 = vld [vmem:[%s515 + $0x58] sm:$0xff]
        %v530 = vld [vmem:[%s515 + $0x60] sm:$0xff]
        %v531 = vld [vmem:[%s515 + $0x68] sm:$0xff]
        %v532 = vld [vmem:[%s515 + $0x70] sm:$0xff]
        %v533 = vld [vmem:[%s515 + $0x78] sm:$0xff]
        %v534 = vld [vmem:[%s2] sm:$0xff]
        %v535 = vld [vmem:[%s2 + $0x8] sm:$0xff]
        %v536 = vld [vmem:[%s3] sm:$0x1]
        %v538 = vlaneseq
        %v539 = vshrl.u32 %v538, 7
        %v540 = vsub.s32 0, %v539
        %v541 = vrot.slane %v536, %v540
        %vm543 = vcmask 130048
        %v545 = vsel %vm543, %v518, 0
        %v548 = vsel %vm543, %v519, 0
        %v551 = vsel %vm543, %v520, 0
        %v554 = vsel %vm543, %v521, 0
        %v557 = vsel %vm543, %v522, 0
        %v560 = vsel %vm543, %v523, 0
        %v563 = vsel %vm543, %v524, 0
        %v566 = vsel %vm543, %v525, 0
        %v569 = vsel %vm543, %v526, 0
        %v572 = vsel %vm543, %v527, 0
        %v575 = vsel %vm543, %v528, 0
        %v578 = vsel %vm543, %v529, 0
        %v581 = vsel %vm543, %v530, 0
        %v584 = vsel %vm543, %v531, 0
        %v587 = vsel %vm543, %v532, 0
        %v590 = vsel %vm543, %v533, 0
        %592 = vmatprep.subr.mxu0 0.0
        %593 = vmatpush1.msra.mxu0 %v534
        %594 = vmatprep.subr.mxu0 0.0
        %595 = vmatpush1.msra.mxu0 %v535
        %596 = vmatprep.subr.mxu0 0.0
        %597 = vmatpush1.msra.mxu0 0.0
        %598 = vmatprep.subr.mxu0 0.0
        %599 = vmatpush1.msra.mxu0 0.0
        %600 = vmatprep.subr.mxu0 0.0
        %601 = vmatpush1.msra.mxu0 0.0
        %602 = vmatprep.subr.mxu0 0.0
        %603 = vmatpush1.msra.mxu0 0.0
        %604 = vmatprep.subr.mxu0 0.0
        %605 = vmatpush1.msra.mxu0 0.0
        %606 = vmatprep.subr.mxu0 0.0
        %607 = vmatpush1.msra.mxu0 0.0
        %608 = vmatprep.subr.mxu0 0.0
        %609 = vmatpush1.msra.mxu0 0.0
        %610 = vmatprep.subr.mxu0 0.0
        %611 = vmatpush1.msra.mxu0 0.0
        %612 = vmatprep.subr.mxu0 0.0
        %613 = vmatpush1.msra.mxu0 0.0
        %614 = vmatprep.subr.mxu0 0.0
        %615 = vmatpush1.msra.mxu0 0.0
        %616 = vmatprep.subr.mxu0 0.0
        %617 = vmatpush1.msra.mxu0 0.0
        %618 = vmatprep.subr.mxu0 0.0
        %619 = vmatpush1.msra.mxu0 0.0
        %620 = vmatprep.subr.mxu0 0.0
        %621 = vmatpush1.msra.mxu0 0.0
        %622 = vmatprep.subr.mxu0 0.0
        %623 = vmatpush1.msra.mxu0 0.0
        %624 = vmatprep.subr.mxu0 0.0
        %625 = vmatpush1.msra.mxu0 0.0
        %626 = vmatprep.subr.mxu0 0.0
        %627 = vmatpush1.msra.mxu0 0.0
        %628 = vmatprep.subr.mxu0 0.0
        %629 = vmatpush1.msra.mxu0 0.0
        %630 = vmatprep.subr.mxu0 0.0
        %631 = vmatpush1.msra.mxu0 0.0
        %632 = vmatprep.subr.mxu0 0.0
        %633 = vmatpush1.msra.mxu0 0.0
        %634 = vmatprep.subr.mxu0 0.0
        %635 = vmatpush1.msra.mxu0 0.0
        %636 = vmatprep.subr.mxu0 0.0
        %637 = vmatpush1.msra.mxu0 0.0
        %638 = vmatprep.subr.mxu0 0.0
        %639 = vmatpush1.msra.mxu0 0.0
        %640 = vmatprep.subr.mxu0 0.0
        %641 = vmatpush1.msra.mxu0 0.0
        %642 = vmatprep.subr.mxu0 0.0
        %643 = vmatpush1.msra.mxu0 0.0
        %644 = vmatprep.subr.mxu0 0.0
        %645 = vmatpush1.msra.mxu0 0.0
        %646 = vmatprep.subr.mxu0 0.0
        %647 = vmatpush1.msra.mxu0 0.0
        %648 = vmatprep.subr.mxu0 0.0
        %649 = vmatpush1.msra.mxu0 0.0
        %650 = vmatprep.subr.mxu0 0.0
        %651 = vmatpush1.msra.mxu0 0.0
        %652 = vmatprep.subr.mxu0 0.0
        %653 = vmatpush1.msra.mxu0 0.0
        %654 = vmatprep.subr.mxu0 0.0
        %655 = vmatpush1.msra.mxu0 0.0
        %656 = vmatprep.mubr.f32.mxu0 0.0
        %657 = vmatmul.mubr.f32.gmra.mrb[0].mxu0 %v545
        %v658 = vpop.f32.mrb[0].mxu0
        %v659 = vadd.f32 %v541, %v658
        %v660 = vpop.f32.mrb[0].mxu0
        %661 = vmatprep.mubr.f32.mxu0 0.0
        %662 = vmatmul.mubr.f32.gmra.mrb[0].mxu0 %v548
        %v663 = vpop.f32.mrb[0].mxu0
        %v664 = vadd.f32 %v541, %v663
        %v665 = vpop.f32.mrb[0].mxu0
        %666 = vmatprep.mubr.f32.mxu0 0.0
        %667 = vmatmul.mubr.f32.gmra.mrb[0].mxu0 %v551
        %v668 = vpop.f32.mrb[0].mxu0
        %v669 = vadd.f32 %v541, %v668
        %v670 = vpop.f32.mrb[0].mxu0
        %671 = vmatprep.mubr.f32.mxu0 0.0
        %672 = vmatmul.mubr.f32.gmra.mrb[0].mxu0 %v554
        %v673 = vpop.f32.mrb[0].mxu0
        %v674 = vadd.f32 %v541, %v673
        %v675 = vpop.f32.mrb[0].mxu0
        %676 = vmatprep.mubr.f32.mxu0 0.0
        %677 = vmatmul.mubr.f32.gmra.mrb[0].mxu0 %v557
        %v678 = vpop.f32.mrb[0].mxu0
        %v679 = vadd.f32 %v541, %v678
        %v680 = vpop.f32.mrb[0].mxu0
        %681 = vmatprep.mubr.f32.mxu0 0.0
        %682 = vmatmul.mubr.f32.gmra.mrb[0].mxu0 %v560
        %v683 = vpop.f32.mrb[0].mxu0
        %v684 = vadd.f32 %v541, %v683
        %v685 = vpop.f32.mrb[0].mxu0
        %686 = vmatprep.mubr.f32.mxu0 0.0
        %687 = vmatmul.mubr.f32.gmra.mrb[0].mxu0 %v563
        %v688 = vpop.f32.mrb[0].mxu0
        %v689 = vadd.f32 %v541, %v688
        %v690 = vpop.f32.mrb[0].mxu0
        %691 = vmatprep.mubr.f32.mxu0 0.0
        %692 = vmatmul.mubr.f32.gmra.mrb[0].mxu0 %v566
        %v693 = vpop.f32.mrb[0].mxu0
        %v694 = vadd.f32 %v541, %v693
        %v695 = vpop.f32.mrb[0].mxu0
        %696 = vmatprep.mubr.f32.mxu0 0.0
        %697 = vmatmul.mubr.f32.gmra.mrb[0].mxu0 %v569
        %v698 = vpop.f32.mrb[0].mxu0
        %v699 = vadd.f32 %v541, %v698
        %v700 = vpop.f32.mrb[0].mxu0
        %701 = vmatprep.mubr.f32.mxu0 0.0
        %702 = vmatmul.mubr.f32.gmra.mrb[0].mxu0 %v572
        %v703 = vpop.f32.mrb[0].mxu0
        %v704 = vadd.f32 %v541, %v703
        %v705 = vpop.f32.mrb[0].mxu0
        %706 = vmatprep.mubr.f32.mxu0 0.0
        %707 = vmatmul.mubr.f32.gmra.mrb[0].mxu0 %v575
        %v708 = vpop.f32.mrb[0].mxu0
        %v709 = vadd.f32 %v541, %v708
        %v710 = vpop.f32.mrb[0].mxu0
        %711 = vmatprep.mubr.f32.mxu0 0.0
        %712 = vmatmul.mubr.f32.gmra.mrb[0].mxu0 %v578
        %v713 = vpop.f32.mrb[0].mxu0
        %v714 = vadd.f32 %v541, %v713
        %v715 = vpop.f32.mrb[0].mxu0
        %716 = vmatprep.mubr.f32.mxu0 0.0
        %717 = vmatmul.mubr.f32.gmra.mrb[0].mxu0 %v581
        %v718 = vpop.f32.mrb[0].mxu0
        %v719 = vadd.f32 %v541, %v718
        %v720 = vpop.f32.mrb[0].mxu0
        %721 = vmatprep.mubr.f32.mxu0 0.0
        %722 = vmatmul.mubr.f32.gmra.mrb[0].mxu0 %v584
        %v723 = vpop.f32.mrb[0].mxu0
        %v724 = vadd.f32 %v541, %v723
        %v725 = vpop.f32.mrb[0].mxu0
        %726 = vmatprep.mubr.f32.mxu0 0.0
        %727 = vmatmul.mubr.f32.gmra.mrb[0].mxu0 %v587
        %v728 = vpop.f32.mrb[0].mxu0
        %v729 = vadd.f32 %v541, %v728
        %v730 = vpop.f32.mrb[0].mxu0
        %731 = vmatprep.mubr.f32.mxu0 0.0
        %732 = vmatmul.mubr.f32.gmra.mrb[0].mxu0 %v590
        %v733 = vpop.f32.mrb[0].mxu0
        %v734 = vadd.f32 %v541, %v733
        %v735 = vpop.f32.mrb[0].mxu0
        %736 = vdwg.mxu0
        %vm737 = vcmp.gt.f32.partialorder %v659, 0.0
        %vm738 = vcmp.gt.f32.partialorder %v664, 0.0
        %vm739 = vcmp.gt.f32.partialorder %v669, 0.0
        %vm740 = vcmp.gt.f32.partialorder %v674, 0.0
        %vm741 = vcmp.gt.f32.partialorder %v679, 0.0
        %vm742 = vcmp.gt.f32.partialorder %v684, 0.0
        %vm743 = vcmp.gt.f32.partialorder %v689, 0.0
        %vm744 = vcmp.gt.f32.partialorder %v694, 0.0
        %vm745 = vcmp.gt.f32.partialorder %v699, 0.0
        %vm746 = vcmp.gt.f32.partialorder %v704, 0.0
        %vm747 = vcmp.gt.f32.partialorder %v709, 0.0
        %vm748 = vcmp.gt.f32.partialorder %v714, 0.0
        %vm749 = vcmp.gt.f32.partialorder %v719, 0.0
        %vm750 = vcmp.gt.f32.partialorder %v724, 0.0
        %vm751 = vcmp.gt.f32.partialorder %v729, 0.0
        %vm752 = vcmp.gt.f32.partialorder %v734, 0.0
        %v753 = vmul.f32 %v659, 1.442695
        %v754 = vpow.pop %v753
        %v755 = vmul.f32 %v664, 1.442695
        %v756 = vpow.pop %v755
        %v757 = vmul.f32 %v669, 1.442695
        %v758 = vpow.pop %v757
        %v759 = vmul.f32 %v674, 1.442695
        %v760 = vpow.pop %v759
        %v761 = vmul.f32 %v679, 1.442695
        %v762 = vpow.pop %v761
        %v763 = vmul.f32 %v684, 1.442695
        %v764 = vpow.pop %v763
        %v765 = vmul.f32 %v689, 1.442695
        %v766 = vpow.pop %v765
        %v767 = vmul.f32 %v694, 1.442695
        %v768 = vpow.pop %v767
        %v769 = vmul.f32 %v699, 1.442695
        %v770 = vpow.pop %v769
        %v771 = vmul.f32 %v704, 1.442695
        %v772 = vpow.pop %v771
        %v773 = vmul.f32 %v709, 1.442695
        %v774 = vpow.pop %v773
        %v775 = vmul.f32 %v714, 1.442695
        %v776 = vpow.pop %v775
        %v777 = vmul.f32 %v719, 1.442695
        %v778 = vpow.pop %v777
        %v779 = vmul.f32 %v724, 1.442695
        %v780 = vpow.pop %v779
        %v781 = vmul.f32 %v729, 1.442695
        %v782 = vpow.pop %v781
        %v783 = vmul.f32 %v734, 1.442695
        %v784 = vpow.pop %v783
        %v785 = vsub.f32 %v754, 1.0
        %v786 = vsub.f32 %v756, 1.0
        %v787 = vsub.f32 %v758, 1.0
        %v788 = vsub.f32 %v760, 1.0
        %v789 = vsub.f32 %v762, 1.0
        %v790 = vsub.f32 %v764, 1.0
        %v791 = vsub.f32 %v766, 1.0
        %v792 = vsub.f32 %v768, 1.0
        %v793 = vsub.f32 %v770, 1.0
        %v794 = vsub.f32 %v772, 1.0
        %v795 = vsub.f32 %v774, 1.0
        %v796 = vsub.f32 %v776, 1.0
        %v797 = vsub.f32 %v778, 1.0
        %v798 = vsub.f32 %v780, 1.0
        %v799 = vsub.f32 %v782, 1.0
        %v800 = vsub.f32 %v784, 1.0
        %v801 = vsel %vm737, %v659, %v785
        %v802 = vsel %vm738, %v664, %v786
        %v803 = vsel %vm739, %v669, %v787
        %v804 = vsel %vm740, %v674, %v788
        %v805 = vsel %vm741, %v679, %v789
        %v806 = vsel %vm742, %v684, %v790
        %v807 = vsel %vm743, %v689, %v791
        %v808 = vsel %vm744, %v694, %v792
        %v809 = vsel %vm745, %v699, %v793
        %v810 = vsel %vm746, %v704, %v794
        %v811 = vsel %vm747, %v709, %v795
        %v812 = vsel %vm748, %v714, %v796
        %v813 = vsel %vm749, %v719, %v797
        %v814 = vsel %vm750, %v724, %v798
        %v815 = vsel %vm751, %v729, %v799
        %v816 = vsel %vm752, %v734, %v800
        %v817 = vld [vmem:[%s4] sm:$0xff]
        %v818 = vld [vmem:[%s4 + $0x8] sm:$0xff]
        %v819 = vld [vmem:[%s4 + $0x10] sm:$0xff]
        %v820 = vld [vmem:[%s4 + $0x18] sm:$0xff]
        %v821 = vld [vmem:[%s5] sm:$0x1]
        %v823 = vlaneseq
        %v824 = vshrl.u32 %v823, 7
        %v825 = vsub.s32 0, %v824
        %v826 = vrot.slane %v821, %v825
        %vm828 = vcmask 261120
        %v830 = vsel %vm828, %v801, 0
        %v833 = vsel %vm828, %v802, 0
        %v836 = vsel %vm828, %v803, 0
        %v839 = vsel %vm828, %v804, 0
        %v842 = vsel %vm828, %v805, 0
        %v845 = vsel %vm828, %v806, 0
        %v848 = vsel %vm828, %v807, 0
        %v851 = vsel %vm828, %v808, 0
        %v854 = vsel %vm828, %v809, 0
        %v857 = vsel %vm828, %v810, 0
        %v860 = vsel %vm828, %v811, 0
        %v863 = vsel %vm828, %v812, 0
        %v866 = vsel %vm828, %v813, 0
        %v869 = vsel %vm828, %v814, 0
        %v872 = vsel %vm828, %v815, 0
        %v875 = vsel %vm828, %v816, 0
        %877 = vmatprep.subr.mxu0 0.0
        %878 = vmatpush1.msra.mxu0 %v817
        %879 = vmatprep.subr.mxu0 0.0
        %880 = vmatpush1.msra.mxu0 %v818
        %881 = vmatprep.subr.mxu0 0.0
        %882 = vmatpush1.msra.mxu0 %v819
        %883 = vmatprep.subr.mxu0 0.0
        %884 = vmatpush1.msra.mxu0 %v820
        %885 = vmatprep.subr.mxu0 0.0
        %886 = vmatpush1.msra.mxu0 0.0
        %887 = vmatprep.subr.mxu0 0.0
        %888 = vmatpush1.msra.mxu0 0.0
        %889 = vmatprep.subr.mxu0 0.0
        %890 = vmatpush1.msra.mxu0 0.0
        %891 = vmatprep.subr.mxu0 0.0
        %892 = vmatpush1.msra.mxu0 0.0
        %893 = vmatprep.subr.mxu0 0.0
        %894 = vmatpush1.msra.mxu0 0.0
        %895 = vmatprep.subr.mxu0 0.0
        %896 = vmatpush1.msra.mxu0 0.0
        %897 = vmatprep.subr.mxu0 0.0
        %898 = vmatpush1.msra.mxu0 0.0
        %899 = vmatprep.subr.mxu0 0.0
        %900 = vmatpush1.msra.mxu0 0.0
        %901 = vmatprep.subr.mxu0 0.0
        %902 = vmatpush1.msra.mxu0 0.0
        %903 = vmatprep.subr.mxu0 0.0
        %904 = vmatpush1.msra.mxu0 0.0
        %905 = vmatprep.subr.mxu0 0.0
        %906 = vmatpush1.msra.mxu0 0.0
        %907 = vmatprep.subr.mxu0 0.0
        %908 = vmatpush1.msra.mxu0 0.0
        %909 = vmatprep.subr.mxu0 0.0
        %910 = vmatpush1.msra.mxu0 0.0
        %911 = vmatprep.subr.mxu0 0.0
        %912 = vmatpush1.msra.mxu0 0.0
        %913 = vmatprep.subr.mxu0 0.0
        %914 = vmatpush1.msra.mxu0 0.0
        %915 = vmatprep.subr.mxu0 0.0
        %916 = vmatpush1.msra.mxu0 0.0
        %917 = vmatprep.subr.mxu0 0.0
        %918 = vmatpush1.msra.mxu0 0.0
        %919 = vmatprep.subr.mxu0 0.0
        %920 = vmatpush1.msra.mxu0 0.0
        %921 = vmatprep.subr.mxu0 0.0
        %922 = vmatpush1.msra.mxu0 0.0
        %923 = vmatprep.subr.mxu0 0.0
        %924 = vmatpush1.msra.mxu0 0.0
        %925 = vmatprep.subr.mxu0 0.0
        %926 = vmatpush1.msra.mxu0 0.0
        %927 = vmatprep.subr.mxu0 0.0
        %928 = vmatpush1.msra.mxu0 0.0
        %929 = vmatprep.subr.mxu0 0.0
        %930 = vmatpush1.msra.mxu0 0.0
        %931 = vmatprep.subr.mxu0 0.0
        %932 = vmatpush1.msra.mxu0 0.0
        %933 = vmatprep.subr.mxu0 0.0
        %934 = vmatpush1.msra.mxu0 0.0
        %935 = vmatprep.subr.mxu0 0.0
        %936 = vmatpush1.msra.mxu0 0.0
        %937 = vmatprep.subr.mxu0 0.0
        %938 = vmatpush1.msra.mxu0 0.0
        %939 = vmatprep.subr.mxu0 0.0
        %940 = vmatpush1.msra.mxu0 0.0
        %941 = vmatprep.mubr.f32.mxu0 0.0
        %942 = vmatmul.mubr.f32.gmra.mrb[0].mxu0 %v830
        %v943 = vpop.f32.mrb[0].mxu0
        %v944 = vadd.f32 %v826, %v943
        %v945 = vpop.f32.mrb[0].mxu0
        %946 = vmatprep.mubr.f32.mxu0 0.0
        %947 = vmatmul.mubr.f32.gmra.mrb[0].mxu0 %v833
        %v948 = vpop.f32.mrb[0].mxu0
        %v949 = vadd.f32 %v826, %v948
        %v950 = vpop.f32.mrb[0].mxu0
        %951 = vmatprep.mubr.f32.mxu0 0.0
        %952 = vmatmul.mubr.f32.gmra.mrb[0].mxu0 %v836
        %v953 = vpop.f32.mrb[0].mxu0
        %v954 = vadd.f32 %v826, %v953
        %v955 = vpop.f32.mrb[0].mxu0
        %956 = vmatprep.mubr.f32.mxu0 0.0
        %957 = vmatmul.mubr.f32.gmra.mrb[0].mxu0 %v839
        %v958 = vpop.f32.mrb[0].mxu0
        %v959 = vadd.f32 %v826, %v958
        %v960 = vpop.f32.mrb[0].mxu0
        %961 = vmatprep.mubr.f32.mxu0 0.0
        %962 = vmatmul.mubr.f32.gmra.mrb[0].mxu0 %v842
        %v963 = vpop.f32.mrb[0].mxu0
        %v964 = vadd.f32 %v826, %v963
        %v965 = vpop.f32.mrb[0].mxu0
        %966 = vmatprep.mubr.f32.mxu0 0.0
        %967 = vmatmul.mubr.f32.gmra.mrb[0].mxu0 %v845
        %v968 = vpop.f32.mrb[0].mxu0
        %v969 = vadd.f32 %v826, %v968
        %v970 = vpop.f32.mrb[0].mxu0
        %971 = vmatprep.mubr.f32.mxu0 0.0
        %972 = vmatmul.mubr.f32.gmra.mrb[0].mxu0 %v848
        %v973 = vpop.f32.mrb[0].mxu0
        %v974 = vadd.f32 %v826, %v973
        %v975 = vpop.f32.mrb[0].mxu0
        %976 = vmatprep.mubr.f32.mxu0 0.0
        %977 = vmatmul.mubr.f32.gmra.mrb[0].mxu0 %v851
        %v978 = vpop.f32.mrb[0].mxu0
        %v979 = vadd.f32 %v826, %v978
        %v980 = vpop.f32.mrb[0].mxu0
        %981 = vmatprep.mubr.f32.mxu0 0.0
        %982 = vmatmul.mubr.f32.gmra.mrb[0].mxu0 %v854
        %v983 = vpop.f32.mrb[0].mxu0
        %v984 = vadd.f32 %v826, %v983
        %v985 = vpop.f32.mrb[0].mxu0
        %986 = vmatprep.mubr.f32.mxu0 0.0
        %987 = vmatmul.mubr.f32.gmra.mrb[0].mxu0 %v857
        %v988 = vpop.f32.mrb[0].mxu0
        %v989 = vadd.f32 %v826, %v988
        %v990 = vpop.f32.mrb[0].mxu0
        %991 = vmatprep.mubr.f32.mxu0 0.0
        %992 = vmatmul.mubr.f32.gmra.mrb[0].mxu0 %v860
        %v993 = vpop.f32.mrb[0].mxu0
        %v994 = vadd.f32 %v826, %v993
        %v995 = vpop.f32.mrb[0].mxu0
        %996 = vmatprep.mubr.f32.mxu0 0.0
        %997 = vmatmul.mubr.f32.gmra.mrb[0].mxu0 %v863
        %v998 = vpop.f32.mrb[0].mxu0
        %v999 = vadd.f32 %v826, %v998
        %v1000 = vpop.f32.mrb[0].mxu0
        %1001 = vmatprep.mubr.f32.mxu0 0.0
        %1002 = vmatmul.mubr.f32.gmra.mrb[0].mxu0 %v866
        %v1003 = vpop.f32.mrb[0].mxu0
        %v1004 = vadd.f32 %v826, %v1003
        %v1005 = vpop.f32.mrb[0].mxu0
        %1006 = vmatprep.mubr.f32.mxu0 0.0
        %1007 = vmatmul.mubr.f32.gmra.mrb[0].mxu0 %v869
        %v1008 = vpop.f32.mrb[0].mxu0
        %v1009 = vadd.f32 %v826, %v1008
        %v1010 = vpop.f32.mrb[0].mxu0
        %1011 = vmatprep.mubr.f32.mxu0 0.0
        %1012 = vmatmul.mubr.f32.gmra.mrb[0].mxu0 %v872
        %v1013 = vpop.f32.mrb[0].mxu0
        %v1014 = vadd.f32 %v826, %v1013
        %v1015 = vpop.f32.mrb[0].mxu0
        %1016 = vmatprep.mubr.f32.mxu0 0.0
        %1017 = vmatmul.mubr.f32.gmra.mrb[0].mxu0 %v875
        %v1018 = vpop.f32.mrb[0].mxu0
        %v1019 = vadd.f32 %v826, %v1018
        %v1020 = vpop.f32.mrb[0].mxu0
        %1021 = vdwg.mxu0
        %vm1022 = vcmp.gt.f32.partialorder %v944, 0.0
        %vm1023 = vcmp.gt.f32.partialorder %v949, 0.0
        %vm1024 = vcmp.gt.f32.partialorder %v954, 0.0
        %vm1025 = vcmp.gt.f32.partialorder %v959, 0.0
        %vm1026 = vcmp.gt.f32.partialorder %v964, 0.0
        %vm1027 = vcmp.gt.f32.partialorder %v969, 0.0
        %vm1028 = vcmp.gt.f32.partialorder %v974, 0.0
        %vm1029 = vcmp.gt.f32.partialorder %v979, 0.0
        %vm1030 = vcmp.gt.f32.partialorder %v984, 0.0
        %vm1031 = vcmp.gt.f32.partialorder %v989, 0.0
        %vm1032 = vcmp.gt.f32.partialorder %v994, 0.0
        %vm1033 = vcmp.gt.f32.partialorder %v999, 0.0
        %vm1034 = vcmp.gt.f32.partialorder %v1004, 0.0
        %vm1035 = vcmp.gt.f32.partialorder %v1009, 0.0
        %vm1036 = vcmp.gt.f32.partialorder %v1014, 0.0
        %vm1037 = vcmp.gt.f32.partialorder %v1019, 0.0
        %v1038 = vmul.f32 %v944, 1.442695
        %v1039 = vpow.pop %v1038
        %v1040 = vmul.f32 %v949, 1.442695
        %v1041 = vpow.pop %v1040
        %v1042 = vmul.f32 %v954, 1.442695
        %v1043 = vpow.pop %v1042
        %v1044 = vmul.f32 %v959, 1.442695
        %v1045 = vpow.pop %v1044
        %v1046 = vmul.f32 %v964, 1.442695
        %v1047 = vpow.pop %v1046
        %v1048 = vmul.f32 %v969, 1.442695
        %v1049 = vpow.pop %v1048
        %v1050 = vmul.f32 %v974, 1.442695
        %v1051 = vpow.pop %v1050
        %v1052 = vmul.f32 %v979, 1.442695
        %v1053 = vpow.pop %v1052
        %v1054 = vmul.f32 %v984, 1.442695
        %v1055 = vpow.pop %v1054
        %v1056 = vmul.f32 %v989, 1.442695
        %v1057 = vpow.pop %v1056
        %v1058 = vmul.f32 %v994, 1.442695
        %v1059 = vpow.pop %v1058
        %v1060 = vmul.f32 %v999, 1.442695
        %v1061 = vpow.pop %v1060
        %v1062 = vmul.f32 %v1004, 1.442695
        %v1063 = vpow.pop %v1062
        %v1064 = vmul.f32 %v1009, 1.442695
        %v1065 = vpow.pop %v1064
        %v1066 = vmul.f32 %v1014, 1.442695
        %v1067 = vpow.pop %v1066
        %v1068 = vmul.f32 %v1019, 1.442695
        %v1069 = vpow.pop %v1068
        %v1070 = vsub.f32 %v1039, 1.0
        %v1071 = vsub.f32 %v1041, 1.0
        %v1072 = vsub.f32 %v1043, 1.0
        %v1073 = vsub.f32 %v1045, 1.0
        %v1074 = vsub.f32 %v1047, 1.0
        %v1075 = vsub.f32 %v1049, 1.0
        %v1076 = vsub.f32 %v1051, 1.0
        %v1077 = vsub.f32 %v1053, 1.0
        %v1078 = vsub.f32 %v1055, 1.0
        %v1079 = vsub.f32 %v1057, 1.0
        %v1080 = vsub.f32 %v1059, 1.0
        %v1081 = vsub.f32 %v1061, 1.0
        %v1082 = vsub.f32 %v1063, 1.0
        %v1083 = vsub.f32 %v1065, 1.0
        %v1084 = vsub.f32 %v1067, 1.0
        %v1085 = vsub.f32 %v1069, 1.0
        %v1086 = vsel %vm1022, %v944, %v1070
        %v1087 = vsel %vm1023, %v949, %v1071
        %v1088 = vsel %vm1024, %v954, %v1072
        %v1089 = vsel %vm1025, %v959, %v1073
        %v1090 = vsel %vm1026, %v964, %v1074
        %v1091 = vsel %vm1027, %v969, %v1075
        %v1092 = vsel %vm1028, %v974, %v1076
        %v1093 = vsel %vm1029, %v979, %v1077
        %v1094 = vsel %vm1030, %v984, %v1078
        %v1095 = vsel %vm1031, %v989, %v1079
        %v1096 = vsel %vm1032, %v994, %v1080
        %v1097 = vsel %vm1033, %v999, %v1081
        %v1098 = vsel %vm1034, %v1004, %v1082
        %v1099 = vsel %vm1035, %v1009, %v1083
        %v1100 = vsel %vm1036, %v1014, %v1084
        %v1101 = vsel %vm1037, %v1019, %v1085
        %v1102 = vld [vmem:[%s6] sm:$0xff]
        %v1103 = vld [vmem:[%s6 + $0x8] sm:$0xff]
        %v1104 = vld [vmem:[%s6 + $0x10] sm:$0xff]
        %v1105 = vld [vmem:[%s6 + $0x18] sm:$0xff]
        %v1106 = vld [vmem:[%s7] sm:$0x1]
        %v1108 = vlaneseq
        %v1109 = vshrl.u32 %v1108, 7
        %v1110 = vsub.s32 0, %v1109
        %v1111 = vrot.slane %v1106, %v1110
        %v1114 = vsel %vm828, %v1086, 0
        %v1117 = vsel %vm828, %v1087, 0
        %v1120 = vsel %vm828, %v1088, 0
        %v1123 = vsel %vm828, %v1089, 0
        %v1126 = vsel %vm828, %v1090, 0
        %v1129 = vsel %vm828, %v1091, 0
        %v1132 = vsel %vm828, %v1092, 0
        %v1135 = vsel %vm828, %v1093, 0
        %v1138 = vsel %vm828, %v1094, 0
        %v1141 = vsel %vm828, %v1095, 0
        %v1144 = vsel %vm828, %v1096, 0
        %v1147 = vsel %vm828, %v1097, 0
        %v1150 = vsel %vm828, %v1098, 0
        %v1153 = vsel %vm828, %v1099, 0
        %v1156 = vsel %vm828, %v1100, 0
        %v1159 = vsel %vm828, %v1101, 0
        %1161 = vmatprep.subr.mxu0 0.0
        %1162 = vmatpush1.msra.mxu0 %v1102
        %1163 = vmatprep.subr.mxu0 0.0
        %1164 = vmatpush1.msra.mxu0 %v1103
        %1165 = vmatprep.subr.mxu0 0.0
        %1166 = vmatpush1.msra.mxu0 %v1104
        %1167 = vmatprep.subr.mxu0 0.0
        %1168 = vmatpush1.msra.mxu0 %v1105
        %1169 = vmatprep.subr.mxu0 0.0
        %1170 = vmatpush1.msra.mxu0 0.0
        %1171 = vmatprep.subr.mxu0 0.0
        %1172 = vmatpush1.msra.mxu0 0.0
        %1173 = vmatprep.subr.mxu0 0.0
        %1174 = vmatpush1.msra.mxu0 0.0
        %1175 = vmatprep.subr.mxu0 0.0
        %1176 = vmatpush1.msra.mxu0 0.0
        %1177 = vmatprep.subr.mxu0 0.0
        %1178 = vmatpush1.msra.mxu0 0.0
        %1179 = vmatprep.subr.mxu0 0.0
        %1180 = vmatpush1.msra.mxu0 0.0
        %1181 = vmatprep.subr.mxu0 0.0
        %1182 = vmatpush1.msra.mxu0 0.0
        %1183 = vmatprep.subr.mxu0 0.0
        %1184 = vmatpush1.msra.mxu0 0.0
        %1185 = vmatprep.subr.mxu0 0.0
        %1186 = vmatpush1.msra.mxu0 0.0
        %1187 = vmatprep.subr.mxu0 0.0
        %1188 = vmatpush1.msra.mxu0 0.0
        %1189 = vmatprep.subr.mxu0 0.0
        %1190 = vmatpush1.msra.mxu0 0.0
        %1191 = vmatprep.subr.mxu0 0.0
        %1192 = vmatpush1.msra.mxu0 0.0
        %1193 = vmatprep.subr.mxu0 0.0
        %1194 = vmatpush1.msra.mxu0 0.0
        %1195 = vmatprep.subr.mxu0 0.0
        %1196 = vmatpush1.msra.mxu0 0.0
        %1197 = vmatprep.subr.mxu0 0.0
        %1198 = vmatpush1.msra.mxu0 0.0
        %1199 = vmatprep.subr.mxu0 0.0
        %1200 = vmatpush1.msra.mxu0 0.0
        %1201 = vmatprep.subr.mxu0 0.0
        %1202 = vmatpush1.msra.mxu0 0.0
        %1203 = vmatprep.subr.mxu0 0.0
        %1204 = vmatpush1.msra.mxu0 0.0
        %1205 = vmatprep.subr.mxu0 0.0
        %1206 = vmatpush1.msra.mxu0 0.0
        %1207 = vmatprep.subr.mxu0 0.0
        %1208 = vmatpush1.msra.mxu0 0.0
        %1209 = vmatprep.subr.mxu0 0.0
        %1210 = vmatpush1.msra.mxu0 0.0
        %1211 = vmatprep.subr.mxu0 0.0
        %1212 = vmatpush1.msra.mxu0 0.0
        %1213 = vmatprep.subr.mxu0 0.0
        %1214 = vmatpush1.msra.mxu0 0.0
        %1215 = vmatprep.subr.mxu0 0.0
        %1216 = vmatpush1.msra.mxu0 0.0
        %1217 = vmatprep.subr.mxu0 0.0
        %1218 = vmatpush1.msra.mxu0 0.0
        %1219 = vmatprep.subr.mxu0 0.0
        %1220 = vmatpush1.msra.mxu0 0.0
        %1221 = vmatprep.subr.mxu0 0.0
        %1222 = vmatpush1.msra.mxu0 0.0
        %1223 = vmatprep.subr.mxu0 0.0
        %1224 = vmatpush1.msra.mxu0 0.0
        %1225 = vmatprep.mubr.f32.mxu0 0.0
        %1226 = vmatmul.mubr.f32.gmra.mrb[0].mxu0 %v1114
        %v1227 = vpop.f32.mrb[0].mxu0
        %v1228 = vadd.f32 %v1111, %v1227
        %v1229 = vpop.f32.mrb[0].mxu0
        %1230 = vmatprep.mubr.f32.mxu0 0.0
        %1231 = vmatmul.mubr.f32.gmra.mrb[0].mxu0 %v1117
        %v1232 = vpop.f32.mrb[0].mxu0
        %v1233 = vadd.f32 %v1111, %v1232
        %v1234 = vpop.f32.mrb[0].mxu0
        %1235 = vmatprep.mubr.f32.mxu0 0.0
        %1236 = vmatmul.mubr.f32.gmra.mrb[0].mxu0 %v1120
        %v1237 = vpop.f32.mrb[0].mxu0
        %v1238 = vadd.f32 %v1111, %v1237
        %v1239 = vpop.f32.mrb[0].mxu0
        %1240 = vmatprep.mubr.f32.mxu0 0.0
        %1241 = vmatmul.mubr.f32.gmra.mrb[0].mxu0 %v1123
        %v1242 = vpop.f32.mrb[0].mxu0
        %v1243 = vadd.f32 %v1111, %v1242
        %v1244 = vpop.f32.mrb[0].mxu0
        %1245 = vmatprep.mubr.f32.mxu0 0.0
        %1246 = vmatmul.mubr.f32.gmra.mrb[0].mxu0 %v1126
        %v1247 = vpop.f32.mrb[0].mxu0
        %v1248 = vadd.f32 %v1111, %v1247
        %v1249 = vpop.f32.mrb[0].mxu0
        %1250 = vmatprep.mubr.f32.mxu0 0.0
        %1251 = vmatmul.mubr.f32.gmra.mrb[0].mxu0 %v1129
        %v1252 = vpop.f32.mrb[0].mxu0
        %v1253 = vadd.f32 %v1111, %v1252
        %v1254 = vpop.f32.mrb[0].mxu0
        %1255 = vmatprep.mubr.f32.mxu0 0.0
        %1256 = vmatmul.mubr.f32.gmra.mrb[0].mxu0 %v1132
        %v1257 = vpop.f32.mrb[0].mxu0
        %v1258 = vadd.f32 %v1111, %v1257
        %v1259 = vpop.f32.mrb[0].mxu0
        %1260 = vmatprep.mubr.f32.mxu0 0.0
        %1261 = vmatmul.mubr.f32.gmra.mrb[0].mxu0 %v1135
        %v1262 = vpop.f32.mrb[0].mxu0
        %v1263 = vadd.f32 %v1111, %v1262
        %v1264 = vpop.f32.mrb[0].mxu0
        %1265 = vmatprep.mubr.f32.mxu0 0.0
        %1266 = vmatmul.mubr.f32.gmra.mrb[0].mxu0 %v1138
        %v1267 = vpop.f32.mrb[0].mxu0
        %v1268 = vadd.f32 %v1111, %v1267
        %v1269 = vpop.f32.mrb[0].mxu0
        %1270 = vmatprep.mubr.f32.mxu0 0.0
        %1271 = vmatmul.mubr.f32.gmra.mrb[0].mxu0 %v1141
        %v1272 = vpop.f32.mrb[0].mxu0
        %v1273 = vadd.f32 %v1111, %v1272
        %v1274 = vpop.f32.mrb[0].mxu0
        %1275 = vmatprep.mubr.f32.mxu0 0.0
        %1276 = vmatmul.mubr.f32.gmra.mrb[0].mxu0 %v1144
        %v1277 = vpop.f32.mrb[0].mxu0
        %v1278 = vadd.f32 %v1111, %v1277
        %v1279 = vpop.f32.mrb[0].mxu0
        %1280 = vmatprep.mubr.f32.mxu0 0.0
        %1281 = vmatmul.mubr.f32.gmra.mrb[0].mxu0 %v1147
        %v1282 = vpop.f32.mrb[0].mxu0
        %v1283 = vadd.f32 %v1111, %v1282
        %v1284 = vpop.f32.mrb[0].mxu0
        %1285 = vmatprep.mubr.f32.mxu0 0.0
        %1286 = vmatmul.mubr.f32.gmra.mrb[0].mxu0 %v1150
        %v1287 = vpop.f32.mrb[0].mxu0
        %v1288 = vadd.f32 %v1111, %v1287
        %v1289 = vpop.f32.mrb[0].mxu0
        %1290 = vmatprep.mubr.f32.mxu0 0.0
        %1291 = vmatmul.mubr.f32.gmra.mrb[0].mxu0 %v1153
        %v1292 = vpop.f32.mrb[0].mxu0
        %v1293 = vadd.f32 %v1111, %v1292
        %v1294 = vpop.f32.mrb[0].mxu0
        %1295 = vmatprep.mubr.f32.mxu0 0.0
        %1296 = vmatmul.mubr.f32.gmra.mrb[0].mxu0 %v1156
        %v1297 = vpop.f32.mrb[0].mxu0
        %v1298 = vadd.f32 %v1111, %v1297
        %v1299 = vpop.f32.mrb[0].mxu0
        %1300 = vmatprep.mubr.f32.mxu0 0.0
        %1301 = vmatmul.mubr.f32.gmra.mrb[0].mxu0 %v1159
        %v1302 = vpop.f32.mrb[0].mxu0
        %v1303 = vadd.f32 %v1111, %v1302
        %v1304 = vpop.f32.mrb[0].mxu0
        %1305 = vdwg.mxu0
        %v1306 = vld [vmem:[%s509] sm:$0xff]
        %v1307 = vld [vmem:[%s509 + $0x8] sm:$0xff]
        %v1308 = vld [vmem:[%s509 + $0x10] sm:$0xff]
        %v1309 = vld [vmem:[%s509 + $0x18] sm:$0xff]
        %v1310 = vld [vmem:[%s509 + $0x20] sm:$0xff]
        %v1311 = vld [vmem:[%s509 + $0x28] sm:$0xff]
        %v1312 = vld [vmem:[%s509 + $0x30] sm:$0xff]
        %v1313 = vld [vmem:[%s509 + $0x38] sm:$0xff]
        %v1314 = vld [vmem:[%s509 + $0x40] sm:$0xff]
        %v1315 = vld [vmem:[%s509 + $0x48] sm:$0xff]
        %v1316 = vld [vmem:[%s509 + $0x50] sm:$0xff]
        %v1317 = vld [vmem:[%s509 + $0x58] sm:$0xff]
        %v1318 = vld [vmem:[%s509 + $0x60] sm:$0xff]
        %v1319 = vld [vmem:[%s509 + $0x68] sm:$0xff]
        %v1320 = vld [vmem:[%s509 + $0x70] sm:$0xff]
        %v1321 = vld [vmem:[%s509 + $0x78] sm:$0xff]
        %v1322 = vld [vmem:[%s8] sm:$0xff]
        %v1323 = vld [vmem:[%s8 + $0x8] sm:$0xff]
        %v1324 = vld [vmem:[%s8 + $0x10] sm:$0xff]
        %v1325 = vld [vmem:[%s8 + $0x18] sm:$0xff]
        %v1326 = vld [vmem:[%s8 + $0x20] sm:$0xff]
        %v1327 = vld [vmem:[%s8 + $0x28] sm:$0xff]
        %v1328 = vld [vmem:[%s8 + $0x30] sm:$0xff]
        %v1329 = vld [vmem:[%s8 + $0x38] sm:$0xff]
        %v1330 = vld [vmem:[%s9] sm:$0xff]
        %v1331 = vld [vmem:[%s9 + $0x8] sm:$0xff]
        %v1332 = vld [vmem:[%s9 + $0x10] sm:$0xff]
        %v1333 = vld [vmem:[%s9 + $0x18] sm:$0xff]
        %v1334 = vld [vmem:[%s9 + $0x20] sm:$0xff]
        %v1335 = vld [vmem:[%s9 + $0x28] sm:$0xff]
        %v1336 = vld [vmem:[%s9 + $0x30] sm:$0xff]
        %v1337 = vld [vmem:[%s9 + $0x38] sm:$0xff]
        %v1338 = vld [vmem:[%s9 + $0x40] sm:$0xff]
        %v1339 = vld [vmem:[%s9 + $0x48] sm:$0xff]
        %v1340 = vld [vmem:[%s9 + $0x50] sm:$0xff]
        %v1341 = vld [vmem:[%s9 + $0x58] sm:$0xff]
        %v1342 = vld [vmem:[%s9 + $0x60] sm:$0xff]
        %v1343 = vld [vmem:[%s9 + $0x68] sm:$0xff]
        %v1344 = vld [vmem:[%s9 + $0x70] sm:$0xff]
        %v1345 = vld [vmem:[%s9 + $0x78] sm:$0xff]
        %1346 = vmatprep.subr.mxu0 0.0
        %1347 = vmatpush1.msra.mxu0 %v1330
        %1348 = vmatprep.subr.mxu0 0.0
        %1349 = vmatpush1.msra.mxu0 %v1331
        %1350 = vmatprep.subr.mxu0 0.0
        %1351 = vmatpush1.msra.mxu0 %v1332
        %1352 = vmatprep.subr.mxu0 0.0
        %1353 = vmatpush1.msra.mxu0 %v1333
        %1354 = vmatprep.subr.mxu0 0.0
        %1355 = vmatpush1.msra.mxu0 %v1334
        %1356 = vmatprep.subr.mxu0 0.0
        %1357 = vmatpush1.msra.mxu0 %v1335
        %1358 = vmatprep.subr.mxu0 0.0
        %1359 = vmatpush1.msra.mxu0 %v1336
        %1360 = vmatprep.subr.mxu0 0.0
        %1361 = vmatpush1.msra.mxu0 %v1337
        %1362 = vmatprep.subr.mxu0 0.0
        %1363 = vmatpush1.msra.mxu0 %v1338
        %1364 = vmatprep.subr.mxu0 0.0
        %1365 = vmatpush1.msra.mxu0 %v1339
        %1366 = vmatprep.subr.mxu0 0.0
        %1367 = vmatpush1.msra.mxu0 %v1340
        %1368 = vmatprep.subr.mxu0 0.0
        %1369 = vmatpush1.msra.mxu0 %v1341
        %1370 = vmatprep.subr.mxu0 0.0
        %1371 = vmatpush1.msra.mxu0 %v1342
        %1372 = vmatprep.subr.mxu0 0.0
        %1373 = vmatpush1.msra.mxu0 %v1343
        %1374 = vmatprep.subr.mxu0 0.0
        %1375 = vmatpush1.msra.mxu0 %v1344
        %1376 = vmatprep.subr.mxu0 0.0
        %1377 = vmatpush1.msra.mxu0 %v1345
        %1378 = vmatprep.subr.mxu0 0.0
        %1379 = vmatpush1.msra.mxu0 0.0
        %1380 = vmatprep.subr.mxu0 0.0
        %1381 = vmatpush1.msra.mxu0 0.0
        %1382 = vmatprep.subr.mxu0 0.0
        %1383 = vmatpush1.msra.mxu0 0.0
        %1384 = vmatprep.subr.mxu0 0.0
        %1385 = vmatpush1.msra.mxu0 0.0
        %1386 = vmatprep.subr.mxu0 0.0
        %1387 = vmatpush1.msra.mxu0 0.0
        %1388 = vmatprep.subr.mxu0 0.0
        %1389 = vmatpush1.msra.mxu0 0.0
        %1390 = vmatprep.subr.mxu0 0.0
        %1391 = vmatpush1.msra.mxu0 0.0
        %1392 = vmatprep.subr.mxu0 0.0
        %1393 = vmatpush1.msra.mxu0 0.0
        %1394 = vmatprep.subr.mxu0 0.0
        %1395 = vmatpush1.msra.mxu0 0.0
        %1396 = vmatprep.subr.mxu0 0.0
        %1397 = vmatpush1.msra.mxu0 0.0
        %1398 = vmatprep.subr.mxu0 0.0
        %1399 = vmatpush1.msra.mxu0 0.0
        %1400 = vmatprep.subr.mxu0 0.0
        %1401 = vmatpush1.msra.mxu0 0.0
        %1402 = vmatprep.subr.mxu0 0.0
        %1403 = vmatpush1.msra.mxu0 0.0
        %1404 = vmatprep.subr.mxu0 0.0
        %1405 = vmatpush1.msra.mxu0 0.0
        %1406 = vmatprep.subr.mxu0 0.0
        %1407 = vmatpush1.msra.mxu0 0.0
        %1408 = vmatprep.subr.mxu0 0.0
        %1409 = vmatpush1.msra.mxu0 0.0
        %1410 = vmatprep.mubr.f32.mxu0 0.0
        %1411 = vmatmul.mubr.f32.gmra.mrb[0].mxu0 %v1228
        %v1412 = vpop.f32.mrb[0].mxu0
        %v1413 = vadd.f32 0.0, %v1412
        %v1414 = vpop.f32.mrb[0].mxu0
        %1415 = vmatprep.mubr.f32.mxu0 0.0
        %1416 = vmatmul.mubr.f32.gmra.mrb[0].mxu0 %v1233
        %v1417 = vpop.f32.mrb[0].mxu0
        %v1418 = vadd.f32 0.0, %v1417
        %v1419 = vpop.f32.mrb[0].mxu0
        %1420 = vmatprep.mubr.f32.mxu0 0.0
        %1421 = vmatmul.mubr.f32.gmra.mrb[0].mxu0 %v1238
        %v1422 = vpop.f32.mrb[0].mxu0
        %v1423 = vadd.f32 0.0, %v1422
        %v1424 = vpop.f32.mrb[0].mxu0
        %1425 = vmatprep.mubr.f32.mxu0 0.0
        %1426 = vmatmul.mubr.f32.gmra.mrb[0].mxu0 %v1243
        %v1427 = vpop.f32.mrb[0].mxu0
        %v1428 = vadd.f32 0.0, %v1427
        %v1429 = vpop.f32.mrb[0].mxu0
        %1430 = vmatprep.mubr.f32.mxu0 0.0
        %1431 = vmatmul.mubr.f32.gmra.mrb[0].mxu0 %v1248
        %v1432 = vpop.f32.mrb[0].mxu0
        %v1433 = vadd.f32 0.0, %v1432
        %v1434 = vpop.f32.mrb[0].mxu0
        %1435 = vmatprep.mubr.f32.mxu0 0.0
        %1436 = vmatmul.mubr.f32.gmra.mrb[0].mxu0 %v1253
        %v1437 = vpop.f32.mrb[0].mxu0
        %v1438 = vadd.f32 0.0, %v1437
        %v1439 = vpop.f32.mrb[0].mxu0
        %1440 = vmatprep.mubr.f32.mxu0 0.0
        %1441 = vmatmul.mubr.f32.gmra.mrb[0].mxu0 %v1258
        %v1442 = vpop.f32.mrb[0].mxu0
        %v1443 = vadd.f32 0.0, %v1442
        %v1444 = vpop.f32.mrb[0].mxu0
        %1445 = vmatprep.mubr.f32.mxu0 0.0
        %1446 = vmatmul.mubr.f32.gmra.mrb[0].mxu0 %v1263
        %v1447 = vpop.f32.mrb[0].mxu0
        %v1448 = vadd.f32 0.0, %v1447
        %v1449 = vpop.f32.mrb[0].mxu0
        %1450 = vmatprep.mubr.f32.mxu0 0.0
        %1451 = vmatmul.mubr.f32.gmra.mrb[0].mxu0 %v1268
        %v1452 = vpop.f32.mrb[0].mxu0
        %v1453 = vadd.f32 0.0, %v1452
        %v1454 = vpop.f32.mrb[0].mxu0
        %1455 = vmatprep.mubr.f32.mxu0 0.0
        %1456 = vmatmul.mubr.f32.gmra.mrb[0].mxu0 %v1273
        %v1457 = vpop.f32.mrb[0].mxu0
        %v1458 = vadd.f32 0.0, %v1457
        %v1459 = vpop.f32.mrb[0].mxu0
        %1460 = vmatprep.mubr.f32.mxu0 0.0
        %1461 = vmatmul.mubr.f32.gmra.mrb[0].mxu0 %v1278
        %v1462 = vpop.f32.mrb[0].mxu0
        %v1463 = vadd.f32 0.0, %v1462
        %v1464 = vpop.f32.mrb[0].mxu0
        %1465 = vmatprep.mubr.f32.mxu0 0.0
        %1466 = vmatmul.mubr.f32.gmra.mrb[0].mxu0 %v1283
        %v1467 = vpop.f32.mrb[0].mxu0
        %v1468 = vadd.f32 0.0, %v1467
        %v1469 = vpop.f32.mrb[0].mxu0
        %1470 = vmatprep.mubr.f32.mxu0 0.0
        %1471 = vmatmul.mubr.f32.gmra.mrb[0].mxu0 %v1288
        %v1472 = vpop.f32.mrb[0].mxu0
        %v1473 = vadd.f32 0.0, %v1472
        %v1474 = vpop.f32.mrb[0].mxu0
        %1475 = vmatprep.mubr.f32.mxu0 0.0
        %1476 = vmatmul.mubr.f32.gmra.mrb[0].mxu0 %v1293
        %v1477 = vpop.f32.mrb[0].mxu0
        %v1478 = vadd.f32 0.0, %v1477
        %v1479 = vpop.f32.mrb[0].mxu0
        %1480 = vmatprep.mubr.f32.mxu0 0.0
        %1481 = vmatmul.mubr.f32.gmra.mrb[0].mxu0 %v1298
        %v1482 = vpop.f32.mrb[0].mxu0
        %v1483 = vadd.f32 0.0, %v1482
        %v1484 = vpop.f32.mrb[0].mxu0
        %1485 = vmatprep.mubr.f32.mxu0 0.0
        %1486 = vmatmul.mubr.f32.gmra.mrb[0].mxu0 %v1303
        %v1487 = vpop.f32.mrb[0].mxu0
        %v1488 = vadd.f32 0.0, %v1487
        %v1489 = vpop.f32.mrb[0].mxu0
        %1490 = vdwg.mxu0
        %vm1491 = vcmask 523264
        %v1493 = vsel %vm1491, %v1306, 0
        %v1496 = vsel %vm1491, %v1307, 0
        %v1499 = vsel %vm1491, %v1308, 0
        %v1502 = vsel %vm1491, %v1309, 0
        %v1505 = vsel %vm1491, %v1310, 0
        %v1508 = vsel %vm1491, %v1311, 0
        %v1511 = vsel %vm1491, %v1312, 0
        %v1514 = vsel %vm1491, %v1313, 0
        %v1517 = vsel %vm1491, %v1314, 0
        %v1520 = vsel %vm1491, %v1315, 0
        %v1523 = vsel %vm1491, %v1316, 0
        %v1526 = vsel %vm1491, %v1317, 0
        %v1529 = vsel %vm1491, %v1318, 0
        %v1532 = vsel %vm1491, %v1319, 0
        %v1535 = vsel %vm1491, %v1320, 0
        %v1538 = vsel %vm1491, %v1321, 0
        %1540 = vmatprep.subr.mxu0 0.0
        %1541 = vmatpush1.msra.mxu0 %v1322
        %1542 = vmatprep.subr.mxu0 0.0
        %1543 = vmatpush1.msra.mxu0 %v1323
        %1544 = vmatprep.subr.mxu0 0.0
        %1545 = vmatpush1.msra.mxu0 %v1324
        %1546 = vmatprep.subr.mxu0 0.0
        %1547 = vmatpush1.msra.mxu0 %v1325
        %1548 = vmatprep.subr.mxu0 0.0
        %1549 = vmatpush1.msra.mxu0 %v1326
        %1550 = vmatprep.subr.mxu0 0.0
        %1551 = vmatpush1.msra.mxu0 %v1327
        %1552 = vmatprep.subr.mxu0 0.0
        %1553 = vmatpush1.msra.mxu0 %v1328
        %1554 = vmatprep.subr.mxu0 0.0
        %1555 = vmatpush1.msra.mxu0 %v1329
        %1556 = vmatprep.subr.mxu0 0.0
        %1557 = vmatpush1.msra.mxu0 0.0
        %1558 = vmatprep.subr.mxu0 0.0
        %1559 = vmatpush1.msra.mxu0 0.0
        %1560 = vmatprep.subr.mxu0 0.0
        %1561 = vmatpush1.msra.mxu0 0.0
        %1562 = vmatprep.subr.mxu0 0.0
        %1563 = vmatpush1.msra.mxu0 0.0
        %1564 = vmatprep.subr.mxu0 0.0
        %1565 = vmatpush1.msra.mxu0 0.0
        %1566 = vmatprep.subr.mxu0 0.0
        %1567 = vmatpush1.msra.mxu0 0.0
        %1568 = vmatprep.subr.mxu0 0.0
        %1569 = vmatpush1.msra.mxu0 0.0
        %1570 = vmatprep.subr.mxu0 0.0
        %1571 = vmatpush1.msra.mxu0 0.0
        %1572 = vmatprep.subr.mxu0 0.0
        %1573 = vmatpush1.msra.mxu0 0.0
        %1574 = vmatprep.subr.mxu0 0.0
        %1575 = vmatpush1.msra.mxu0 0.0
        %1576 = vmatprep.subr.mxu0 0.0
        %1577 = vmatpush1.msra.mxu0 0.0
        %1578 = vmatprep.subr.mxu0 0.0
        %1579 = vmatpush1.msra.mxu0 0.0
        %1580 = vmatprep.subr.mxu0 0.0
        %1581 = vmatpush1.msra.mxu0 0.0
        %1582 = vmatprep.subr.mxu0 0.0
        %1583 = vmatpush1.msra.mxu0 0.0
        %1584 = vmatprep.subr.mxu0 0.0
        %1585 = vmatpush1.msra.mxu0 0.0
        %1586 = vmatprep.subr.mxu0 0.0
        %1587 = vmatpush1.msra.mxu0 0.0
        %1588 = vmatprep.subr.mxu0 0.0
        %1589 = vmatpush1.msra.mxu0 0.0
        %1590 = vmatprep.subr.mxu0 0.0
        %1591 = vmatpush1.msra.mxu0 0.0
        %1592 = vmatprep.subr.mxu0 0.0
        %1593 = vmatpush1.msra.mxu0 0.0
        %1594 = vmatprep.subr.mxu0 0.0
        %1595 = vmatpush1.msra.mxu0 0.0
        %1596 = vmatprep.subr.mxu0 0.0
        %1597 = vmatpush1.msra.mxu0 0.0
        %1598 = vmatprep.subr.mxu0 0.0
        %1599 = vmatpush1.msra.mxu0 0.0
        %1600 = vmatprep.subr.mxu0 0.0
        %1601 = vmatpush1.msra.mxu0 0.0
        %1602 = vmatprep.subr.mxu0 0.0
        %1603 = vmatpush1.msra.mxu0 0.0
        %1604 = vmatprep.mubr.f32.mxu0 0.0
        %1605 = vmatmul.mubr.f32.gmra.mrb[0].mxu0 %v1493
        %v1606 = vpop.f32.mrb[0].mxu0
        %v1607 = vadd.f32 %v1413, %v1606
        %v1608 = vpop.f32.mrb[0].mxu0
        %1609 = vmatprep.mubr.f32.mxu0 0.0
        %1610 = vmatmul.mubr.f32.gmra.mrb[0].mxu0 %v1496
        %v1611 = vpop.f32.mrb[0].mxu0
        %v1612 = vadd.f32 %v1418, %v1611
        %v1613 = vpop.f32.mrb[0].mxu0
        %1614 = vmatprep.mubr.f32.mxu0 0.0
        %1615 = vmatmul.mubr.f32.gmra.mrb[0].mxu0 %v1499
        %v1616 = vpop.f32.mrb[0].mxu0
        %v1617 = vadd.f32 %v1423, %v1616
        %v1618 = vpop.f32.mrb[0].mxu0
        %1619 = vmatprep.mubr.f32.mxu0 0.0
        %1620 = vmatmul.mubr.f32.gmra.mrb[0].mxu0 %v1502
        %v1621 = vpop.f32.mrb[0].mxu0
        %v1622 = vadd.f32 %v1428, %v1621
        %v1623 = vpop.f32.mrb[0].mxu0
        %1624 = vmatprep.mubr.f32.mxu0 0.0
        %1625 = vmatmul.mubr.f32.gmra.mrb[0].mxu0 %v1505
        %v1626 = vpop.f32.mrb[0].mxu0
        %v1627 = vadd.f32 %v1433, %v1626
        %v1628 = vpop.f32.mrb[0].mxu0
        %1629 = vmatprep.mubr.f32.mxu0 0.0
        %1630 = vmatmul.mubr.f32.gmra.mrb[0].mxu0 %v1508
        %v1631 = vpop.f32.mrb[0].mxu0
        %v1632 = vadd.f32 %v1438, %v1631
        %v1633 = vpop.f32.mrb[0].mxu0
        %1634 = vmatprep.mubr.f32.mxu0 0.0
        %1635 = vmatmul.mubr.f32.gmra.mrb[0].mxu0 %v1511
        %v1636 = vpop.f32.mrb[0].mxu0
        %v1637 = vadd.f32 %v1443, %v1636
        %v1638 = vpop.f32.mrb[0].mxu0
        %1639 = vmatprep.mubr.f32.mxu0 0.0
        %1640 = vmatmul.mubr.f32.gmra.mrb[0].mxu0 %v1514
        %v1641 = vpop.f32.mrb[0].mxu0
        %v1642 = vadd.f32 %v1448, %v1641
        %v1643 = vpop.f32.mrb[0].mxu0
        %1644 = vmatprep.mubr.f32.mxu0 0.0
        %1645 = vmatmul.mubr.f32.gmra.mrb[0].mxu0 %v1517
        %v1646 = vpop.f32.mrb[0].mxu0
        %v1647 = vadd.f32 %v1453, %v1646
        %v1648 = vpop.f32.mrb[0].mxu0
        %1649 = vmatprep.mubr.f32.mxu0 0.0
        %1650 = vmatmul.mubr.f32.gmra.mrb[0].mxu0 %v1520
        %v1651 = vpop.f32.mrb[0].mxu0
        %v1652 = vadd.f32 %v1458, %v1651
        %v1653 = vpop.f32.mrb[0].mxu0
        %1654 = vmatprep.mubr.f32.mxu0 0.0
        %1655 = vmatmul.mubr.f32.gmra.mrb[0].mxu0 %v1523
        %v1656 = vpop.f32.mrb[0].mxu0
        %v1657 = vadd.f32 %v1463, %v1656
        %v1658 = vpop.f32.mrb[0].mxu0
        %1659 = vmatprep.mubr.f32.mxu0 0.0
        %1660 = vmatmul.mubr.f32.gmra.mrb[0].mxu0 %v1526
        %v1661 = vpop.f32.mrb[0].mxu0
        %v1662 = vadd.f32 %v1468, %v1661
        %v1663 = vpop.f32.mrb[0].mxu0
        %1664 = vmatprep.mubr.f32.mxu0 0.0
        %1665 = vmatmul.mubr.f32.gmra.mrb[0].mxu0 %v1529
        %v1666 = vpop.f32.mrb[0].mxu0
        %v1667 = vadd.f32 %v1473, %v1666
        %v1668 = vpop.f32.mrb[0].mxu0
        %1669 = vmatprep.mubr.f32.mxu0 0.0
        %1670 = vmatmul.mubr.f32.gmra.mrb[0].mxu0 %v1532
        %v1671 = vpop.f32.mrb[0].mxu0
        %v1672 = vadd.f32 %v1478, %v1671
        %v1673 = vpop.f32.mrb[0].mxu0
        %1674 = vmatprep.mubr.f32.mxu0 0.0
        %1675 = vmatmul.mubr.f32.gmra.mrb[0].mxu0 %v1535
        %v1676 = vpop.f32.mrb[0].mxu0
        %v1677 = vadd.f32 %v1483, %v1676
        %v1678 = vpop.f32.mrb[0].mxu0
        %1679 = vmatprep.mubr.f32.mxu0 0.0
        %1680 = vmatmul.mubr.f32.gmra.mrb[0].mxu0 %v1538
        %v1681 = vpop.f32.mrb[0].mxu0
        %v1682 = vadd.f32 %v1488, %v1681
        %v1683 = vpop.f32.mrb[0].mxu0
        %1684 = vdwg.mxu0
        %v1685 = vld [vmem:[%s10] sm:$0x1]
        %v1687 = vlaneseq
        %v1688 = vshrl.u32 %v1687, 7
        %v1689 = vsub.s32 0, %v1688
        %v1690 = vrot.slane %v1685, %v1689
        %v1692 = vadd.f32 %v1607, %v1690
        %v1693 = vadd.f32 %v1612, %v1690
        %v1694 = vadd.f32 %v1617, %v1690
        %v1695 = vadd.f32 %v1622, %v1690
        %v1696 = vadd.f32 %v1627, %v1690
        %v1697 = vadd.f32 %v1632, %v1690
        %v1698 = vadd.f32 %v1637, %v1690
        %v1699 = vadd.f32 %v1642, %v1690
        %v1700 = vadd.f32 %v1647, %v1690
        %v1701 = vadd.f32 %v1652, %v1690
        %v1702 = vadd.f32 %v1657, %v1690
        %v1703 = vadd.f32 %v1662, %v1690
        %v1704 = vadd.f32 %v1667, %v1690
        %v1705 = vadd.f32 %v1672, %v1690
        %v1706 = vadd.f32 %v1677, %v1690
        %v1707 = vadd.f32 %v1682, %v1690
        %vm1708 = vcmp.gt.f32.partialorder %v1692, 0.0
        %vm1709 = vcmp.gt.f32.partialorder %v1693, 0.0
        %vm1710 = vcmp.gt.f32.partialorder %v1694, 0.0
        %vm1711 = vcmp.gt.f32.partialorder %v1695, 0.0
        %vm1712 = vcmp.gt.f32.partialorder %v1696, 0.0
        %vm1713 = vcmp.gt.f32.partialorder %v1697, 0.0
        %vm1714 = vcmp.gt.f32.partialorder %v1698, 0.0
        %vm1715 = vcmp.gt.f32.partialorder %v1699, 0.0
        %vm1716 = vcmp.gt.f32.partialorder %v1700, 0.0
        %vm1717 = vcmp.gt.f32.partialorder %v1701, 0.0
        %vm1718 = vcmp.gt.f32.partialorder %v1702, 0.0
        %vm1719 = vcmp.gt.f32.partialorder %v1703, 0.0
        %vm1720 = vcmp.gt.f32.partialorder %v1704, 0.0
        %vm1721 = vcmp.gt.f32.partialorder %v1705, 0.0
        %vm1722 = vcmp.gt.f32.partialorder %v1706, 0.0
        %vm1723 = vcmp.gt.f32.partialorder %v1707, 0.0
        %v1724 = vmul.f32 %v1692, 1.442695
        %v1725 = vpow.pop %v1724
        %v1726 = vmul.f32 %v1693, 1.442695
        %v1727 = vpow.pop %v1726
        %v1728 = vmul.f32 %v1694, 1.442695
        %v1729 = vpow.pop %v1728
        %v1730 = vmul.f32 %v1695, 1.442695
        %v1731 = vpow.pop %v1730
        %v1732 = vmul.f32 %v1696, 1.442695
        %v1733 = vpow.pop %v1732
        %v1734 = vmul.f32 %v1697, 1.442695
        %v1735 = vpow.pop %v1734
        %v1736 = vmul.f32 %v1698, 1.442695
        %v1737 = vpow.pop %v1736
        %v1738 = vmul.f32 %v1699, 1.442695
        %v1739 = vpow.pop %v1738
        %v1740 = vmul.f32 %v1700, 1.442695
        %v1741 = vpow.pop %v1740
        %v1742 = vmul.f32 %v1701, 1.442695
        %v1743 = vpow.pop %v1742
        %v1744 = vmul.f32 %v1702, 1.442695
        %v1745 = vpow.pop %v1744
        %v1746 = vmul.f32 %v1703, 1.442695
        %v1747 = vpow.pop %v1746
        %v1748 = vmul.f32 %v1704, 1.442695
        %v1749 = vpow.pop %v1748
        %v1750 = vmul.f32 %v1705, 1.442695
        %v1751 = vpow.pop %v1750
        %v1752 = vmul.f32 %v1706, 1.442695
        %v1753 = vpow.pop %v1752
        %v1754 = vmul.f32 %v1707, 1.442695
        %v1755 = vpow.pop %v1754
        %v1756 = vsub.f32 %v1725, 1.0
        %v1757 = vsub.f32 %v1727, 1.0
        %v1758 = vsub.f32 %v1729, 1.0
        %v1759 = vsub.f32 %v1731, 1.0
        %v1760 = vsub.f32 %v1733, 1.0
        %v1761 = vsub.f32 %v1735, 1.0
        %v1762 = vsub.f32 %v1737, 1.0
        %v1763 = vsub.f32 %v1739, 1.0
        %v1764 = vsub.f32 %v1741, 1.0
        %v1765 = vsub.f32 %v1743, 1.0
        %v1766 = vsub.f32 %v1745, 1.0
        %v1767 = vsub.f32 %v1747, 1.0
        %v1768 = vsub.f32 %v1749, 1.0
        %v1769 = vsub.f32 %v1751, 1.0
        %v1770 = vsub.f32 %v1753, 1.0
        %v1771 = vsub.f32 %v1755, 1.0
        %v1772 = vsel %vm1708, %v1692, %v1756
        %v1773 = vsel %vm1709, %v1693, %v1757
        %v1774 = vsel %vm1710, %v1694, %v1758
        %v1775 = vsel %vm1711, %v1695, %v1759
        %v1776 = vsel %vm1712, %v1696, %v1760
        %v1777 = vsel %vm1713, %v1697, %v1761
        %v1778 = vsel %vm1714, %v1698, %v1762
        %v1779 = vsel %vm1715, %v1699, %v1763
        %v1780 = vsel %vm1716, %v1700, %v1764
        %v1781 = vsel %vm1717, %v1701, %v1765
        %v1782 = vsel %vm1718, %v1702, %v1766
        %v1783 = vsel %vm1719, %v1703, %v1767
        %v1784 = vsel %vm1720, %v1704, %v1768
        %v1785 = vsel %vm1721, %v1705, %v1769
        %v1786 = vsel %vm1722, %v1706, %v1770
        %v1787 = vsel %vm1723, %v1707, %v1771
        %v1788 = vld [vmem:[%s11] sm:$0xff]
        %v1789 = vld [vmem:[%s11 + $0x8] sm:$0xff]
        %v1790 = vld [vmem:[%s11 + $0x10] sm:$0xff]
        %v1791 = vld [vmem:[%s11 + $0x18] sm:$0xff]
        %v1792 = vld [vmem:[%s11 + $0x20] sm:$0xff]
        %v1793 = vld [vmem:[%s11 + $0x28] sm:$0xff]
        %v1794 = vld [vmem:[%s11 + $0x30] sm:$0xff]
        %v1795 = vld [vmem:[%s11 + $0x38] sm:$0xff]
        %v1796 = vld [vmem:[%s11 + $0x40] sm:$0xff]
        %v1797 = vld [vmem:[%s11 + $0x48] sm:$0xff]
        %v1798 = vld [vmem:[%s11 + $0x50] sm:$0xff]
        %v1799 = vld [vmem:[%s11 + $0x58] sm:$0xff]
        %v1800 = vld [vmem:[%s11 + $0x60] sm:$0xff]
        %v1801 = vld [vmem:[%s11 + $0x68] sm:$0xff]
        %v1802 = vld [vmem:[%s11 + $0x70] sm:$0xff]
        %v1803 = vld [vmem:[%s11 + $0x78] sm:$0xff]
        %v1804 = vld [vmem:[%s12] sm:$0x1]
        %v1806 = vlaneseq
        %v1807 = vshrl.u32 %v1806, 7
        %v1808 = vsub.s32 0, %v1807
        %v1809 = vrot.slane %v1804, %v1808
        %1811 = vmatprep.subr.mxu0 0.0
        %1812 = vmatpush1.msra.mxu0 %v1788
        %1813 = vmatprep.subr.mxu0 0.0
        %1814 = vmatpush1.msra.mxu0 %v1789
        %1815 = vmatprep.subr.mxu0 0.0
        %1816 = vmatpush1.msra.mxu0 %v1790
        %1817 = vmatprep.subr.mxu0 0.0
        %1818 = vmatpush1.msra.mxu0 %v1791
        %1819 = vmatprep.subr.mxu0 0.0
        %1820 = vmatpush1.msra.mxu0 %v1792
        %1821 = vmatprep.subr.mxu0 0.0
        %1822 = vmatpush1.msra.mxu0 %v1793
        %1823 = vmatprep.subr.mxu0 0.0
        %1824 = vmatpush1.msra.mxu0 %v1794
        %1825 = vmatprep.subr.mxu0 0.0
        %1826 = vmatpush1.msra.mxu0 %v1795
        %1827 = vmatprep.subr.mxu0 0.0
        %1828 = vmatpush1.msra.mxu0 %v1796
        %1829 = vmatprep.subr.mxu0 0.0
        %1830 = vmatpush1.msra.mxu0 %v1797
        %1831 = vmatprep.subr.mxu0 0.0
        %1832 = vmatpush1.msra.mxu0 %v1798
        %1833 = vmatprep.subr.mxu0 0.0
        %1834 = vmatpush1.msra.mxu0 %v1799
        %1835 = vmatprep.subr.mxu0 0.0
        %1836 = vmatpush1.msra.mxu0 %v1800
        %1837 = vmatprep.subr.mxu0 0.0
        %1838 = vmatpush1.msra.mxu0 %v1801
        %1839 = vmatprep.subr.mxu0 0.0
        %1840 = vmatpush1.msra.mxu0 %v1802
        %1841 = vmatprep.subr.mxu0 0.0
        %1842 = vmatpush1.msra.mxu0 %v1803
        %1843 = vmatprep.subr.mxu0 0.0
        %1844 = vmatpush1.msra.mxu0 0.0
        %1845 = vmatprep.subr.mxu0 0.0
        %1846 = vmatpush1.msra.mxu0 0.0
        %1847 = vmatprep.subr.mxu0 0.0
        %1848 = vmatpush1.msra.mxu0 0.0
        %1849 = vmatprep.subr.mxu0 0.0
        %1850 = vmatpush1.msra.mxu0 0.0
        %1851 = vmatprep.subr.mxu0 0.0
        %1852 = vmatpush1.msra.mxu0 0.0
        %1853 = vmatprep.subr.mxu0 0.0
        %1854 = vmatpush1.msra.mxu0 0.0
        %1855 = vmatprep.subr.mxu0 0.0
        %1856 = vmatpush1.msra.mxu0 0.0
        %1857 = vmatprep.subr.mxu0 0.0
        %1858 = vmatpush1.msra.mxu0 0.0
        %1859 = vmatprep.subr.mxu0 0.0
        %1860 = vmatpush1.msra.mxu0 0.0
        %1861 = vmatprep.subr.mxu0 0.0
        %1862 = vmatpush1.msra.mxu0 0.0
        %1863 = vmatprep.subr.mxu0 0.0
        %1864 = vmatpush1.msra.mxu0 0.0
        %1865 = vmatprep.subr.mxu0 0.0
        %1866 = vmatpush1.msra.mxu0 0.0
        %1867 = vmatprep.subr.mxu0 0.0
        %1868 = vmatpush1.msra.mxu0 0.0
        %1869 = vmatprep.subr.mxu0 0.0
        %1870 = vmatpush1.msra.mxu0 0.0
        %1871 = vmatprep.subr.mxu0 0.0
        %1872 = vmatpush1.msra.mxu0 0.0
        %1873 = vmatprep.subr.mxu0 0.0
        %1874 = vmatpush1.msra.mxu0 0.0
        %1875 = vmatprep.mubr.f32.mxu0 0.0
        %1876 = vmatmul.mubr.f32.gmra.mrb[0].mxu0 %v1772
        %v1877 = vpop.f32.mrb[0].mxu0
        %v1878 = vadd.f32 %v1809, %v1877
        %v1879 = vpop.f32.mrb[0].mxu0
        %1880 = vmatprep.mubr.f32.mxu0 0.0
        %1881 = vmatmul.mubr.f32.gmra.mrb[0].mxu0 %v1773
        %v1882 = vpop.f32.mrb[0].mxu0
        %v1883 = vadd.f32 %v1809, %v1882
        %v1884 = vpop.f32.mrb[0].mxu0
        %1885 = vmatprep.mubr.f32.mxu0 0.0
        %1886 = vmatmul.mubr.f32.gmra.mrb[0].mxu0 %v1774
        %v1887 = vpop.f32.mrb[0].mxu0
        %v1888 = vadd.f32 %v1809, %v1887
        %v1889 = vpop.f32.mrb[0].mxu0
        %1890 = vmatprep.mubr.f32.mxu0 0.0
        %1891 = vmatmul.mubr.f32.gmra.mrb[0].mxu0 %v1775
        %v1892 = vpop.f32.mrb[0].mxu0
        %v1893 = vadd.f32 %v1809, %v1892
        %v1894 = vpop.f32.mrb[0].mxu0
        %1895 = vmatprep.mubr.f32.mxu0 0.0
        %1896 = vmatmul.mubr.f32.gmra.mrb[0].mxu0 %v1776
        %v1897 = vpop.f32.mrb[0].mxu0
        %v1898 = vadd.f32 %v1809, %v1897
        %v1899 = vpop.f32.mrb[0].mxu0
        %1900 = vmatprep.mubr.f32.mxu0 0.0
        %1901 = vmatmul.mubr.f32.gmra.mrb[0].mxu0 %v1777
        %v1902 = vpop.f32.mrb[0].mxu0
        %v1903 = vadd.f32 %v1809, %v1902
        %v1904 = vpop.f32.mrb[0].mxu0
        %1905 = vmatprep.mubr.f32.mxu0 0.0
        %1906 = vmatmul.mubr.f32.gmra.mrb[0].mxu0 %v1778
        %v1907 = vpop.f32.mrb[0].mxu0
        %v1908 = vadd.f32 %v1809, %v1907
        %v1909 = vpop.f32.mrb[0].mxu0
        %1910 = vmatprep.mubr.f32.mxu0 0.0
        %1911 = vmatmul.mubr.f32.gmra.mrb[0].mxu0 %v1779
        %v1912 = vpop.f32.mrb[0].mxu0
        %v1913 = vadd.f32 %v1809, %v1912
        %v1914 = vpop.f32.mrb[0].mxu0
        %1915 = vmatprep.mubr.f32.mxu0 0.0
        %1916 = vmatmul.mubr.f32.gmra.mrb[0].mxu0 %v1780
        %v1917 = vpop.f32.mrb[0].mxu0
        %v1918 = vadd.f32 %v1809, %v1917
        %v1919 = vpop.f32.mrb[0].mxu0
        %1920 = vmatprep.mubr.f32.mxu0 0.0
        %1921 = vmatmul.mubr.f32.gmra.mrb[0].mxu0 %v1781
        %v1922 = vpop.f32.mrb[0].mxu0
        %v1923 = vadd.f32 %v1809, %v1922
        %v1924 = vpop.f32.mrb[0].mxu0
        %1925 = vmatprep.mubr.f32.mxu0 0.0
        %1926 = vmatmul.mubr.f32.gmra.mrb[0].mxu0 %v1782
        %v1927 = vpop.f32.mrb[0].mxu0
        %v1928 = vadd.f32 %v1809, %v1927
        %v1929 = vpop.f32.mrb[0].mxu0
        %1930 = vmatprep.mubr.f32.mxu0 0.0
        %1931 = vmatmul.mubr.f32.gmra.mrb[0].mxu0 %v1783
        %v1932 = vpop.f32.mrb[0].mxu0
        %v1933 = vadd.f32 %v1809, %v1932
        %v1934 = vpop.f32.mrb[0].mxu0
        %1935 = vmatprep.mubr.f32.mxu0 0.0
        %1936 = vmatmul.mubr.f32.gmra.mrb[0].mxu0 %v1784
        %v1937 = vpop.f32.mrb[0].mxu0
        %v1938 = vadd.f32 %v1809, %v1937
        %v1939 = vpop.f32.mrb[0].mxu0
        %1940 = vmatprep.mubr.f32.mxu0 0.0
        %1941 = vmatmul.mubr.f32.gmra.mrb[0].mxu0 %v1785
        %v1942 = vpop.f32.mrb[0].mxu0
        %v1943 = vadd.f32 %v1809, %v1942
        %v1944 = vpop.f32.mrb[0].mxu0
        %1945 = vmatprep.mubr.f32.mxu0 0.0
        %1946 = vmatmul.mubr.f32.gmra.mrb[0].mxu0 %v1786
        %v1947 = vpop.f32.mrb[0].mxu0
        %v1948 = vadd.f32 %v1809, %v1947
        %v1949 = vpop.f32.mrb[0].mxu0
        %1950 = vmatprep.mubr.f32.mxu0 0.0
        %1951 = vmatmul.mubr.f32.gmra.mrb[0].mxu0 %v1787
        %v1952 = vpop.f32.mrb[0].mxu0
        %v1953 = vadd.f32 %v1809, %v1952
        %v1954 = vpop.f32.mrb[0].mxu0
        %1955 = vdwg.mxu0
        %vm1956 = vcmp.gt.f32.partialorder %v1878, 0.0
        %vm1957 = vcmp.gt.f32.partialorder %v1883, 0.0
        %vm1958 = vcmp.gt.f32.partialorder %v1888, 0.0
        %vm1959 = vcmp.gt.f32.partialorder %v1893, 0.0
        %vm1960 = vcmp.gt.f32.partialorder %v1898, 0.0
        %vm1961 = vcmp.gt.f32.partialorder %v1903, 0.0
        %vm1962 = vcmp.gt.f32.partialorder %v1908, 0.0
        %vm1963 = vcmp.gt.f32.partialorder %v1913, 0.0
        %vm1964 = vcmp.gt.f32.partialorder %v1918, 0.0
        %vm1965 = vcmp.gt.f32.partialorder %v1923, 0.0
        %vm1966 = vcmp.gt.f32.partialorder %v1928, 0.0
        %vm1967 = vcmp.gt.f32.partialorder %v1933, 0.0
        %vm1968 = vcmp.gt.f32.partialorder %v1938, 0.0
        %vm1969 = vcmp.gt.f32.partialorder %v1943, 0.0
        %vm1970 = vcmp.gt.f32.partialorder %v1948, 0.0
        %vm1971 = vcmp.gt.f32.partialorder %v1953, 0.0
        %v1972 = vmul.f32 %v1878, 1.442695
        %v1973 = vpow.pop %v1972
        %v1974 = vmul.f32 %v1883, 1.442695
        %v1975 = vpow.pop %v1974
        %v1976 = vmul.f32 %v1888, 1.442695
        %v1977 = vpow.pop %v1976
        %v1978 = vmul.f32 %v1893, 1.442695
        %v1979 = vpow.pop %v1978
        %v1980 = vmul.f32 %v1898, 1.442695
        %v1981 = vpow.pop %v1980
        %v1982 = vmul.f32 %v1903, 1.442695
        %v1983 = vpow.pop %v1982
        %v1984 = vmul.f32 %v1908, 1.442695
        %v1985 = vpow.pop %v1984
        %v1986 = vmul.f32 %v1913, 1.442695
        %v1987 = vpow.pop %v1986
        %v1988 = vmul.f32 %v1918, 1.442695
        %v1989 = vpow.pop %v1988
        %v1990 = vmul.f32 %v1923, 1.442695
        %v1991 = vpow.pop %v1990
        %v1992 = vmul.f32 %v1928, 1.442695
        %v1993 = vpow.pop %v1992
        %v1994 = vmul.f32 %v1933, 1.442695
        %v1995 = vpow.pop %v1994
        %v1996 = vmul.f32 %v1938, 1.442695
        %v1997 = vpow.pop %v1996
        %v1998 = vmul.f32 %v1943, 1.442695
        %v1999 = vpow.pop %v1998
        %v2000 = vmul.f32 %v1948, 1.442695
        %v2001 = vpow.pop %v2000
        %v2002 = vmul.f32 %v1953, 1.442695
        %v2003 = vpow.pop %v2002
        %v2004 = vsub.f32 %v1973, 1.0
        %v2005 = vsub.f32 %v1975, 1.0
        %v2006 = vsub.f32 %v1977, 1.0
        %v2007 = vsub.f32 %v1979, 1.0
        %v2008 = vsub.f32 %v1981, 1.0
        %v2009 = vsub.f32 %v1983, 1.0
        %v2010 = vsub.f32 %v1985, 1.0
        %v2011 = vsub.f32 %v1987, 1.0
        %v2012 = vsub.f32 %v1989, 1.0
        %v2013 = vsub.f32 %v1991, 1.0
        %v2014 = vsub.f32 %v1993, 1.0
        %v2015 = vsub.f32 %v1995, 1.0
        %v2016 = vsub.f32 %v1997, 1.0
        %v2017 = vsub.f32 %v1999, 1.0
        %v2018 = vsub.f32 %v2001, 1.0
        %v2019 = vsub.f32 %v2003, 1.0
        %v2020 = vsel %vm1956, %v1878, %v2004
        %v2021 = vsel %vm1957, %v1883, %v2005
        %v2022 = vsel %vm1958, %v1888, %v2006
        %v2023 = vsel %vm1959, %v1893, %v2007
        %v2024 = vsel %vm1960, %v1898, %v2008
        %v2025 = vsel %vm1961, %v1903, %v2009
        %v2026 = vsel %vm1962, %v1908, %v2010
        %v2027 = vsel %vm1963, %v1913, %v2011
        %v2028 = vsel %vm1964, %v1918, %v2012
        %v2029 = vsel %vm1965, %v1923, %v2013
        %v2030 = vsel %vm1966, %v1928, %v2014
        %v2031 = vsel %vm1967, %v1933, %v2015
        %v2032 = vsel %vm1968, %v1938, %v2016
        %v2033 = vsel %vm1969, %v1943, %v2017
        %v2034 = vsel %vm1970, %v1948, %v2018
        %v2035 = vsel %vm1971, %v1953, %v2019
        %v2036 = vld [vmem:[%s13] sm:$0xff]
        %v2037 = vld [vmem:[%s13 + $0x8] sm:$0xff]
        %v2038 = vld [vmem:[%s13 + $0x10] sm:$0xff]
        %v2039 = vld [vmem:[%s13 + $0x18] sm:$0xff]
        %v2040 = vld [vmem:[%s13 + $0x20] sm:$0xff]
        %v2041 = vld [vmem:[%s13 + $0x28] sm:$0xff]
        %v2042 = vld [vmem:[%s13 + $0x30] sm:$0xff]
        %v2043 = vld [vmem:[%s13 + $0x38] sm:$0xff]
        %v2044 = vld [vmem:[%s13 + $0x40] sm:$0xff]
        %v2045 = vld [vmem:[%s13 + $0x48] sm:$0xff]
        %v2046 = vld [vmem:[%s13 + $0x50] sm:$0xff]
        %v2047 = vld [vmem:[%s13 + $0x58] sm:$0xff]
        %v2048 = vld [vmem:[%s13 + $0x60] sm:$0xff]
        %v2049 = vld [vmem:[%s13 + $0x68] sm:$0xff]
        %v2050 = vld [vmem:[%s13 + $0x70] sm:$0xff]
        %v2051 = vld [vmem:[%s13 + $0x78] sm:$0xff]
        %v2052 = vld [vmem:[%s14] sm:$0x1]
        %v2054 = vlaneseq
        %v2055 = vshrl.u32 %v2054, 7
        %v2056 = vsub.s32 0, %v2055
        %v2057 = vrot.slane %v2052, %v2056
        %2059 = vmatprep.subr.mxu0 0.0
        %2060 = vmatpush1.msra.mxu0 %v2036
        %2061 = vmatprep.subr.mxu0 0.0
        %2062 = vmatpush1.msra.mxu0 %v2037
        %2063 = vmatprep.subr.mxu0 0.0
        %2064 = vmatpush1.msra.mxu0 %v2038
        %2065 = vmatprep.subr.mxu0 0.0
        %2066 = vmatpush1.msra.mxu0 %v2039
        %2067 = vmatprep.subr.mxu0 0.0
        %2068 = vmatpush1.msra.mxu0 %v2040
        %2069 = vmatprep.subr.mxu0 0.0
        %2070 = vmatpush1.msra.mxu0 %v2041
        %2071 = vmatprep.subr.mxu0 0.0
        %2072 = vmatpush1.msra.mxu0 %v2042
        %2073 = vmatprep.subr.mxu0 0.0
        %2074 = vmatpush1.msra.mxu0 %v2043
        %2075 = vmatprep.subr.mxu0 0.0
        %2076 = vmatpush1.msra.mxu0 %v2044
        %2077 = vmatprep.subr.mxu0 0.0
        %2078 = vmatpush1.msra.mxu0 %v2045
        %2079 = vmatprep.subr.mxu0 0.0
        %2080 = vmatpush1.msra.mxu0 %v2046
        %2081 = vmatprep.subr.mxu0 0.0
        %2082 = vmatpush1.msra.mxu0 %v2047
        %2083 = vmatprep.subr.mxu0 0.0
        %2084 = vmatpush1.msra.mxu0 %v2048
        %2085 = vmatprep.subr.mxu0 0.0
        %2086 = vmatpush1.msra.mxu0 %v2049
        %2087 = vmatprep.subr.mxu0 0.0
        %2088 = vmatpush1.msra.mxu0 %v2050
        %2089 = vmatprep.subr.mxu0 0.0
        %2090 = vmatpush1.msra.mxu0 %v2051
        %2091 = vmatprep.subr.mxu0 0.0
        %2092 = vmatpush1.msra.mxu0 0.0
        %2093 = vmatprep.subr.mxu0 0.0
        %2094 = vmatpush1.msra.mxu0 0.0
        %2095 = vmatprep.subr.mxu0 0.0
        %2096 = vmatpush1.msra.mxu0 0.0
        %2097 = vmatprep.subr.mxu0 0.0
        %2098 = vmatpush1.msra.mxu0 0.0
        %2099 = vmatprep.subr.mxu0 0.0
        %2100 = vmatpush1.msra.mxu0 0.0
        %2101 = vmatprep.subr.mxu0 0.0
        %2102 = vmatpush1.msra.mxu0 0.0
        %2103 = vmatprep.subr.mxu0 0.0
        %2104 = vmatpush1.msra.mxu0 0.0
        %2105 = vmatprep.subr.mxu0 0.0
        %2106 = vmatpush1.msra.mxu0 0.0
        %2107 = vmatprep.subr.mxu0 0.0
        %2108 = vmatpush1.msra.mxu0 0.0
        %2109 = vmatprep.subr.mxu0 0.0
        %2110 = vmatpush1.msra.mxu0 0.0
        %2111 = vmatprep.subr.mxu0 0.0
        %2112 = vmatpush1.msra.mxu0 0.0
        %2113 = vmatprep.subr.mxu0 0.0
        %2114 = vmatpush1.msra.mxu0 0.0
        %2115 = vmatprep.subr.mxu0 0.0
        %2116 = vmatpush1.msra.mxu0 0.0
        %2117 = vmatprep.subr.mxu0 0.0
        %2118 = vmatpush1.msra.mxu0 0.0
        %2119 = vmatprep.subr.mxu0 0.0
        %2120 = vmatpush1.msra.mxu0 0.0
        %2121 = vmatprep.subr.mxu0 0.0
        %2122 = vmatpush1.msra.mxu0 0.0
        %2123 = vmatprep.mubr.f32.mxu0 0.0
        %2124 = vmatmul.mubr.f32.gmra.mrb[0].mxu0 %v2020
        %v2125 = vpop.f32.mrb[0].mxu0
        %v2126 = vadd.f32 %v2057, %v2125
        %v2127 = vpop.f32.mrb[0].mxu0
        %2128 = vmatprep.mubr.f32.mxu0 0.0
        %2129 = vmatmul.mubr.f32.gmra.mrb[0].mxu0 %v2021
        %v2130 = vpop.f32.mrb[0].mxu0
        %v2131 = vadd.f32 %v2057, %v2130
        %v2132 = vpop.f32.mrb[0].mxu0
        %2133 = vmatprep.mubr.f32.mxu0 0.0
        %2134 = vmatmul.mubr.f32.gmra.mrb[0].mxu0 %v2022
        %v2135 = vpop.f32.mrb[0].mxu0
        %v2136 = vadd.f32 %v2057, %v2135
        %v2137 = vpop.f32.mrb[0].mxu0
        %2138 = vmatprep.mubr.f32.mxu0 0.0
        %2139 = vmatmul.mubr.f32.gmra.mrb[0].mxu0 %v2023
        %v2140 = vpop.f32.mrb[0].mxu0
        %v2141 = vadd.f32 %v2057, %v2140
        %v2142 = vpop.f32.mrb[0].mxu0
        %2143 = vmatprep.mubr.f32.mxu0 0.0
        %2144 = vmatmul.mubr.f32.gmra.mrb[0].mxu0 %v2024
        %v2145 = vpop.f32.mrb[0].mxu0
        %v2146 = vadd.f32 %v2057, %v2145
        %v2147 = vpop.f32.mrb[0].mxu0
        %2148 = vmatprep.mubr.f32.mxu0 0.0
        %2149 = vmatmul.mubr.f32.gmra.mrb[0].mxu0 %v2025
        %v2150 = vpop.f32.mrb[0].mxu0
        %v2151 = vadd.f32 %v2057, %v2150
        %v2152 = vpop.f32.mrb[0].mxu0
        %2153 = vmatprep.mubr.f32.mxu0 0.0
        %2154 = vmatmul.mubr.f32.gmra.mrb[0].mxu0 %v2026
        %v2155 = vpop.f32.mrb[0].mxu0
        %v2156 = vadd.f32 %v2057, %v2155
        %v2157 = vpop.f32.mrb[0].mxu0
        %2158 = vmatprep.mubr.f32.mxu0 0.0
        %2159 = vmatmul.mubr.f32.gmra.mrb[0].mxu0 %v2027
        %v2160 = vpop.f32.mrb[0].mxu0
        %v2161 = vadd.f32 %v2057, %v2160
        %v2162 = vpop.f32.mrb[0].mxu0
        %2163 = vmatprep.mubr.f32.mxu0 0.0
        %2164 = vmatmul.mubr.f32.gmra.mrb[0].mxu0 %v2028
        %v2165 = vpop.f32.mrb[0].mxu0
        %v2166 = vadd.f32 %v2057, %v2165
        %v2167 = vpop.f32.mrb[0].mxu0
        %2168 = vmatprep.mubr.f32.mxu0 0.0
        %2169 = vmatmul.mubr.f32.gmra.mrb[0].mxu0 %v2029
        %v2170 = vpop.f32.mrb[0].mxu0
        %v2171 = vadd.f32 %v2057, %v2170
        %v2172 = vpop.f32.mrb[0].mxu0
        %2173 = vmatprep.mubr.f32.mxu0 0.0
        %2174 = vmatmul.mubr.f32.gmra.mrb[0].mxu0 %v2030
        %v2175 = vpop.f32.mrb[0].mxu0
        %v2176 = vadd.f32 %v2057, %v2175
        %v2177 = vpop.f32.mrb[0].mxu0
        %2178 = vmatprep.mubr.f32.mxu0 0.0
        %2179 = vmatmul.mubr.f32.gmra.mrb[0].mxu0 %v2031
        %v2180 = vpop.f32.mrb[0].mxu0
        %v2181 = vadd.f32 %v2057, %v2180
        %v2182 = vpop.f32.mrb[0].mxu0
        %2183 = vmatprep.mubr.f32.mxu0 0.0
        %2184 = vmatmul.mubr.f32.gmra.mrb[0].mxu0 %v2032
        %v2185 = vpop.f32.mrb[0].mxu0
        %v2186 = vadd.f32 %v2057, %v2185
        %v2187 = vpop.f32.mrb[0].mxu0
        %2188 = vmatprep.mubr.f32.mxu0 0.0
        %2189 = vmatmul.mubr.f32.gmra.mrb[0].mxu0 %v2033
        %v2190 = vpop.f32.mrb[0].mxu0
        %v2191 = vadd.f32 %v2057, %v2190
        %v2192 = vpop.f32.mrb[0].mxu0
        %2193 = vmatprep.mubr.f32.mxu0 0.0
        %2194 = vmatmul.mubr.f32.gmra.mrb[0].mxu0 %v2034
        %v2195 = vpop.f32.mrb[0].mxu0
        %v2196 = vadd.f32 %v2057, %v2195
        %v2197 = vpop.f32.mrb[0].mxu0
        %2198 = vmatprep.mubr.f32.mxu0 0.0
        %2199 = vmatmul.mubr.f32.gmra.mrb[0].mxu0 %v2035
        %v2200 = vpop.f32.mrb[0].mxu0
        %v2201 = vadd.f32 %v2057, %v2200
        %v2202 = vpop.f32.mrb[0].mxu0
        %2203 = vdwg.mxu0
        %v2204 = vlaneseq
        %v2205 = vand.u32 %v2204, 127
        %vm2206 = vcmp.lt.s32.totalorder %v2205, 8
        %vm2207 = vweird.f32 %v2126
        %vm2208 = vweird.f32 %v2131
        %vm2209 = vweird.f32 %v2136
        %vm2210 = vweird.f32 %v2141
        %vm2211 = vweird.f32 %v2146
        %vm2212 = vweird.f32 %v2151
        %vm2213 = vweird.f32 %v2156
        %vm2214 = vweird.f32 %v2161
        %vm2215 = vweird.f32 %v2166
        %vm2216 = vweird.f32 %v2171
        %vm2217 = vweird.f32 %v2176
        %vm2218 = vweird.f32 %v2181
        %vm2219 = vweird.f32 %v2186
        %vm2220 = vweird.f32 %v2191
        %vm2221 = vweird.f32 %v2196
        %vm2222 = vweird.f32 %v2201
        %vm2223 = vmand %vm2206, %vm2207
        %vm2224 = vmand %vm2206, %vm2208
        %vm2225 = vmand %vm2206, %vm2209
        %vm2226 = vmand %vm2206, %vm2210
        %vm2227 = vmand %vm2206, %vm2211
        %vm2228 = vmand %vm2206, %vm2212
        %vm2229 = vmand %vm2206, %vm2213
        %vm2230 = vmand %vm2206, %vm2214
        %vm2231 = vmand %vm2206, %vm2215
        %vm2232 = vmand %vm2206, %vm2216
        %vm2233 = vmand %vm2206, %vm2217
        %vm2234 = vmand %vm2206, %vm2218
        %vm2235 = vmand %vm2206, %vm2219
        %vm2236 = vmand %vm2206, %vm2220
        %vm2237 = vmand %vm2206, %vm2221
        %vm2238 = vmand %vm2206, %vm2222
        %v2239 = vsel %vm2223, 0.0, %v2126
        %v2240 = vsel %vm2224, 0.0, %v2131
        %v2241 = vsel %vm2225, 0.0, %v2136
        %v2242 = vsel %vm2226, 0.0, %v2141
        %v2243 = vsel %vm2227, 0.0, %v2146
        %v2244 = vsel %vm2228, 0.0, %v2151
        %v2245 = vsel %vm2229, 0.0, %v2156
        %v2246 = vsel %vm2230, 0.0, %v2161
        %v2247 = vsel %vm2231, 0.0, %v2166
        %v2248 = vsel %vm2232, 0.0, %v2171
        %v2249 = vsel %vm2233, 0.0, %v2176
        %v2250 = vsel %vm2234, 0.0, %v2181
        %v2251 = vsel %vm2235, 0.0, %v2186
        %v2252 = vsel %vm2236, 0.0, %v2191
        %v2253 = vsel %vm2237, 0.0, %v2196
        %v2254 = vsel %vm2238, 0.0, %v2201
        %v2255 = vadd.f32 %v2239, %v1228
        %v2256 = vadd.f32 %v2240, %v1233
        %v2257 = vadd.f32 %v2241, %v1238
        %v2258 = vadd.f32 %v2242, %v1243
        %v2259 = vadd.f32 %v2243, %v1248
        %v2260 = vadd.f32 %v2244, %v1253
        %v2261 = vadd.f32 %v2245, %v1258
        %v2262 = vadd.f32 %v2246, %v1263
        %v2263 = vadd.f32 %v2247, %v1268
        %v2264 = vadd.f32 %v2248, %v1273
        %v2265 = vadd.f32 %v2249, %v1278
        %v2266 = vadd.f32 %v2250, %v1283
        %v2267 = vadd.f32 %v2251, %v1288
        %v2268 = vadd.f32 %v2252, %v1293
        %v2269 = vadd.f32 %v2253, %v1298
        %v2270 = vadd.f32 %v2254, %v1303
        %2271 = vst [vmem:[%s504] sm:$0xff] %v2255
        %2272 = vst [vmem:[%s504 + $0x8] sm:$0xff] %v2256
        %2273 = vst [vmem:[%s504 + $0x10] sm:$0xff] %v2257
        %2274 = vst [vmem:[%s504 + $0x18] sm:$0xff] %v2258
        %2275 = vst [vmem:[%s504 + $0x20] sm:$0xff] %v2259
        %2276 = vst [vmem:[%s504 + $0x28] sm:$0xff] %v2260
        %2277 = vst [vmem:[%s504 + $0x30] sm:$0xff] %v2261
        %2278 = vst [vmem:[%s504 + $0x38] sm:$0xff] %v2262
        %2279 = vst [vmem:[%s504 + $0x40] sm:$0xff] %v2263
        %2280 = vst [vmem:[%s504 + $0x48] sm:$0xff] %v2264
        %2281 = vst [vmem:[%s504 + $0x50] sm:$0xff] %v2265
        %2282 = vst [vmem:[%s504 + $0x58] sm:$0xff] %v2266
        %2283 = vst [vmem:[%s504 + $0x60] sm:$0xff] %v2267
        %2284 = vst [vmem:[%s504 + $0x68] sm:$0xff] %v2268
        %2285 = vst [vmem:[%s504 + $0x70] sm:$0xff] %v2269
        %2286 = vst [vmem:[%s504 + $0x78] sm:$0xff] %v2270
        %s2287 = sand.u32 %s362, 1
        %s2288 = scalar_lea.sflag [#allocation3], %s2287
        %s2289 = sand.u32 %s362, 1
        %s2290 = smul.addr %s2289, 128
        %s2291 = scalar_lea.vmem [#allocation2], %s2290
        // Predicated region
        $region81: #{tpu_custom_call.1} parent=79 // pred_check
          %p2292 = pneg %p372
        $region82: #{tpu_custom_call.1} parent=79 // pred_check_branch
          %2294 = sbr.rel (%p2292) target = $region84
        $region83: #{tpu_custom_call.1} parent=79 // pred_region
          %s2295 = smul.u32 16, %s29
          %s2297 = ssub.s32 2048, 2048
          %2298 = vsyncadd %s2288, %s2297
          %s2299 = smul.addr %s2295, 128
          %s2300 = scalar_lea.hbm %s15, %s2299
          %s2301 = sshll.u32 %s2291, 4
          %s2302 = int_to_ptr.vmem [resolvable:$true] %s2301
          %2307 = dma.vmem_to_hbm [thread:$0]  %s2302, 2048, %s2300, %s2288, 128, 128, 8
        $region84: #{tpu_custom_call.1} parent=79 // pred_fallthru
          _
      $region80: #{tpu_custom_call.1} parent=5 // pred_fallthru
        _
      %p2308 = scmp.le.s32.totalorder 2, %s24
      // Predicated region
      $region85: #{tpu_custom_call.1} parent=5 // pred_check
        %p2309 = pneg %p2308
      $region86: #{tpu_custom_call.1} parent=5 // pred_check_branch
        %2311 = sbr.rel (%p2309) target = $region88
      $region87: #{tpu_custom_call.1} parent=5 // pred_region
        %s2312 = ssub.s32 %s24, 2
        // Predicated region
        $region89: #{tpu_custom_call.1} parent=87 // pred_check
          %p2313 = pneg %p378
        $region90: #{tpu_custom_call.1} parent=87 // pred_check_branch
          %2315 = sbr.rel (%p2313) target = $region92
        $region91: #{tpu_custom_call.1} parent=87 // pred_region
          %s2316 = sand.u32 %s363, 1
          %s2317 = scalar_lea.sflag [#allocation3], %s2316
          %s2318 = sand.u32 %s363, 1
          %s2319 = smul.addr %s2318, 128
          %s2320 = scalar_lea.vmem [#allocation2], %s2319
          %2321 = dma.done %s2317, 2048
        $region92: #{tpu_custom_call.1} parent=87 // pred_fallthru
          _
      $region88: #{tpu_custom_call.1} parent=5 // pred_fallthru
        _
    $region6: #{tpu_custom_call.1} parent=1 // loop_footer
      %s28 = sadd.s32 1, %s24
    $region7: #{tpu_custom_call.1} parent=1 // loop_footer_branch
      %23 = sbr.rel target = $region3
    $region8: #{tpu_custom_call.1} parent=1 // loop_exit
      _
    %2322 = vsyncpa [#allocation3], 1
    %s2323 = scalar_lea.sflag [#allocation3], 1
    %2324 = vsyncpa %s2323, 1

</llo_original>
